<compile_context>
chip_gen: v7x
topology: tpu7x:2x2x1
jax: 0.10.0
libtpu: 0.0.40
codegen_flags: <defaults>
</compile_context>

<pallas_src>
import functools

import jax
import jax.numpy as jnp
from jax.experimental import pallas as pl
from jax.experimental.pallas import tpu as pltpu

NEG_SLOPE = 0.01  # PyTorch nn.LeakyReLU default
OUT_ROWS = 8      # sublane-padded output feature rows (num_act <= 8)


def _leaky_relu(x):
    return jnp.where(x > 0, x, NEG_SLOPE * x)


def mlp_kernel(xT_ref, wpack_ref, fpack_ref, o_ref, *, num_obs, hidden):
    """One batch block of the MLP, feature-major (features on sublanes, batch on lanes).

    xT_ref:    (num_obs, TB)   f32   transposed activations
    wpack_ref: (hidden+8, hidden) bf16  rows [0:H) = W2 (out,in), rows [H:H+8) = W3 padded
    fpack_ref: (hidden, 8)     f32   cols [0:num_obs) = W1 (out,in), then b1, b2, b3-col
    o_ref:     (OUT_ROWS, TB)  f32   rows [0:num_act) are the real outputs
    """
    H = hidden
    xT = xT_ref[...]                                   # (num_obs, TB) f32
    fp = fpack_ref[...]                                # (H, 8) f32
    TB = xT.shape[1]

    # ---- layer 1 on the VPU: K = num_obs is tiny, skip a wasteful MXU pass ----
    h1 = jnp.broadcast_to(fp[:, num_obs:num_obs + 1], (H, TB))          # b1 column
    for k in range(num_obs):                            # static unroll (4 terms)
        h1 = h1 + fp[:, k:k + 1] * xT[k:k + 1, :]
    h1 = _leaky_relu(h1)

    # ---- layer 2 on the MXU: bf16 inputs, f32 accumulate ----
    w2 = wpack_ref[pl.ds(0, H), :]                                       # (H, H) bf16
    h2 = jnp.dot(w2, h1.astype(jnp.bfloat16), preferred_element_type=jnp.float32)
    h2 = _leaky_relu(h2 + fp[:, num_obs + 1:num_obs + 2])

    # ---- layer 3 on the MXU: tiny M = OUT_ROWS output slab ----
    w3 = wpack_ref[pl.ds(H, OUT_ROWS), :]                                # (8, H) bf16
    out = jnp.dot(w3, h2.astype(jnp.bfloat16), preferred_element_type=jnp.float32)
    out = out + fp[:OUT_ROWS, num_obs + 2:num_obs + 3]                   # b3 column (padded w/ 0)
    o_ref[...] = out.astype(o_ref.dtype)


def init_params(key, num_obs=4, num_act=2, hidden=256):
    """Deterministic init mimicking PyTorch Linear's U(-1/sqrt(fan_in), 1/sqrt(fan_in)).

    Weights stored as (in_features, out_features), all f32 (reference orientation).
    """
    ks = jax.random.split(key, 6)

    def linear(kw, kb, fan_in, fan_out):
        bound = 1.0 / jnp.sqrt(jnp.float32(fan_in))
        w = jax.random.uniform(kw, (fan_in, fan_out), jnp.float32, -bound, bound)
        b = jax.random.uniform(kb, (1, fan_out), jnp.float32, -bound, bound)
        return w, b

    W1, b1 = linear(ks[0], ks[1], num_obs, hidden)
    W2, b2 = linear(ks[2], ks[3], hidden, hidden)
    W3, b3 = linear(ks[4], ks[5], hidden, num_act)
    return {"W1": W1, "b1": b1, "W2": W2, "b2": b2, "W3": W3, "b3": b3}


def pack_params(p, *, num_obs=4, hidden=256, num_act=2):
    """Pack the 7 parameter arrays into 2 DMA-friendly, feature-major buffers.

    wpack: (hidden+8, hidden) bf16 -- W2 (out,in) on top, W3 padded to 8 rows below.
    fpack: (hidden, 8) f32         -- cols 0..num_obs-1 = W1 (out,in), then b1, b2, b3.
    """
    H = hidden
    assert num_obs + 3 <= 8, "fpack layout assumes num_obs <= 5"
    assert num_act <= OUT_ROWS

    w2 = p["W2"].T.astype(jnp.bfloat16)                                  # (H, H) (out, in)
    w3 = jnp.zeros((OUT_ROWS, H), jnp.bfloat16).at[:num_act, :].set(
        p["W3"].T.astype(jnp.bfloat16))                                  # (8, H)
    wpack = jnp.concatenate([w2, w3], axis=0)                            # (H+8, H) bf16

    fpack = jnp.zeros((H, 8), jnp.float32)
    fpack = fpack.at[:, :num_obs].set(p["W1"].T)                         # (H, num_obs)
    fpack = fpack.at[:, num_obs].set(p["b1"][0])
    fpack = fpack.at[:, num_obs + 1].set(p["b2"][0])
    fpack = fpack.at[:num_act, num_obs + 2].set(p["b3"][0])
    return wpack, fpack


def net_forward(x, wpack, fpack, *, num_obs=4, hidden=256, num_act=2, block_b=1024):
    """x: (B, num_obs) f32. Returns (B, num_act) f32."""
    B = x.shape[0]
    H = hidden

    # Balanced batch split: even number of equally sized, 128-lane-aligned blocks when the
    # batch is large enough to split (keeps both v7x TensorCores busy); otherwise one block.
    n_blocks = pl.cdiv(B, block_b)
    if n_blocks > 1 and n_blocks % 2 == 1:
        n_blocks += 1
    TB = pl.cdiv(pl.cdiv(B, n_blocks), 128) * 128          # lane-aligned block width
    Bp = n_blocks * TB

    # Feature-major input: x^T zero-padded to (num_obs, Bp) -> contiguous lane-dense DMA.
    xT = jnp.zeros((num_obs, Bp), jnp.float32).at[:, :B].set(x.T)

    kernel = functools.partial(mlp_kernel, num_obs=num_obs, hidden=H)

    cost = pl.CostEstimate(
        flops=2 * Bp * H * (num_obs + H + num_act),
        transcendentals=0,
        bytes_accessed=(xT.size * 4 + wpack.size * 2 + fpack.size * 4
                        + Bp * OUT_ROWS * 4),
    )

    out_t = pl.pallas_call(
        kernel,
        out_shape=jax.ShapeDtypeStruct((OUT_ROWS, Bp), jnp.float32),
        grid_spec=pltpu.PrefetchScalarGridSpec(
            num_scalar_prefetch=0,
            grid=(n_blocks,),
            in_specs=[
                pl.BlockSpec((num_obs, TB), lambda i: (0, i)),         # activations: per block
                pl.BlockSpec((H + OUT_ROWS, H), lambda i: (0, 0)),     # bf16 weights: DMA once
                pl.BlockSpec((H, 8), lambda i: (0, 0)),                # f32 W1 + biases: DMA once
            ],
            out_specs=pl.BlockSpec((OUT_ROWS, TB), lambda i: (0, i)),
        ),
        compiler_params=pltpu.CompilerParams(
            dimension_semantics=("parallel",),   # batch blocks are independent (v7x megacore)
        ),
        cost_estimate=cost,
    )(xT, wpack, fpack)

    # Contiguous (num_act, Bp) strip -> tiny transpose back to batch-major.
    return out_t[:num_act, :B].T


def net_forward_ref(x, p):
    h1 = _leaky_relu(x @ p["W1"] + p["b1"])
    h2 = _leaky_relu(h1 @ p["W2"] + p["b2"])
    return h2 @ p["W3"] + p["b3"]


if __name__ == "__main__":
    key = jax.random.PRNGKey(0)
    k_params, k_x1, k_x2 = jax.random.split(key, 3)

    num_obs, num_act, hidden = 4, 2, 256
    params = init_params(k_params, num_obs=num_obs, num_act=num_act, hidden=hidden)
    wpack, fpack = pack_params(params, num_obs=num_obs, hidden=hidden, num_act=num_act)

    # Small inference batch: single grid block.
    x_small = jax.random.normal(k_x1, (8, num_obs), jnp.float32)
    out_small = net_forward(x_small, wpack, fpack,
                            num_obs=num_obs, hidden=hidden, num_act=num_act)
    jax.block_until_ready(out_small)
    ref_small = net_forward_ref(x_small, params)
    assert out_small.shape == (8, num_act)
    # bf16 weights in the MXU path -> compare against the f32 reference with a looser tolerance.
    assert jnp.allclose(out_small, ref_small, atol=2e-2, rtol=2e-2), \
        float(jnp.max(jnp.abs(out_small - ref_small)))

    # Larger (replay-buffer-like) batch with the default tile: single balanced block.
    x_big = jax.random.normal(k_x2, (300, num_obs), jnp.float32)
    out_big = net_forward(x_big, wpack, fpack,
                          num_obs=num_obs, hidden=hidden, num_act=num_act)
    jax.block_until_ready(out_big)
    ref_big = net_forward_ref(x_big, params)
    assert out_big.shape == (300, num_act)
    assert jnp.allclose(out_big, ref_big, atol=2e-2, rtol=2e-2), \
        float(jnp.max(jnp.abs(out_big - ref_big)))

    # Same batch forced through the multi-block path (even, balanced, 128-aligned blocks):
    # exercises the grid, batch padding, and the parallel dimension semantics.
    out_grid = net_forward(x_big, wpack, fpack,
                           num_obs=num_obs, hidden=hidden, num_act=num_act, block_b=128)
    jax.block_until_ready(out_grid)
    assert out_grid.shape == (300, num_act)
    assert jnp.allclose(out_grid, ref_big, atol=2e-2, rtol=2e-2), \
        float(jnp.max(jnp.abs(out_grid - ref_big)))

    print("KERNEL_OK")
</pallas_src>

<mosaic_0001>
module attributes {stable_mosaic.version = 11 : i64} {
  func.func @mlp_kernel(%arg0: i32, %arg1: memref<4x128xf32, #tpu.memory_space<vmem>>, %arg2: memref<264x256xbf16, #tpu.memory_space<vmem>>, %arg3: memref<256x8xf32, #tpu.memory_space<vmem>>, %arg4: memref<8x128xf32, #tpu.memory_space<vmem>>) attributes {dimension_semantics = [#tpu.dimension_semantics<parallel>], iteration_bounds = array<i64: 1>, scalar_prefetch = 0 : i64, scratch_operands = 0 : i64, tpu.core_type = #tpu.core_type<tc>, window_params = [{transform_indices = @transform_0, window_bounds = array<i64: 4, 128>}, {pipeline_mode = #tpu.pipeline_mode<synchronous>, transform_indices = @transform_1, window_bounds = array<i64: 264, 256>}, {pipeline_mode = #tpu.pipeline_mode<synchronous>, transform_indices = @transform_2, window_bounds = array<i64: 256, 8>}, {transform_indices = @transform_3, window_bounds = array<i64: 8, 128>}]} {
    %c0 = arith.constant 0 : index
    %c0_0 = arith.constant 0 : index
    %0 = vector.load %arg1[%c0, %c0_0] : memref<4x128xf32, #tpu.memory_space<vmem>>, vector<4x128xf32>
    %c0_1 = arith.constant 0 : index
    %c0_2 = arith.constant 0 : index
    %1 = vector.load %arg3[%c0_1, %c0_2] : memref<256x8xf32, #tpu.memory_space<vmem>>, vector<256x8xf32>
    %2 = vector.extract_strided_slice %1 {offsets = [0, 4], sizes = [256, 1], strides = [1, 1]} : vector<256x8xf32> to vector<256x1xf32>
    %3 = vector.shape_cast %2 : vector<256x1xf32> to vector<256x1xf32>
    %4 = vector.broadcast %3 : vector<256x1xf32> to vector<256x128xf32>
    %5 = vector.extract_strided_slice %1 {offsets = [0, 0], sizes = [256, 1], strides = [1, 1]} : vector<256x8xf32> to vector<256x1xf32>
    %6 = vector.extract_strided_slice %0 {offsets = [0, 0], sizes = [1, 128], strides = [1, 1]} : vector<4x128xf32> to vector<1x128xf32>
    %7 = vector.broadcast %5 : vector<256x1xf32> to vector<256x128xf32>
    %8 = vector.broadcast %6 : vector<1x128xf32> to vector<256x128xf32>
    %9 = arith.mulf %7, %8 : vector<256x128xf32>
    %10 = arith.addf %4, %9 : vector<256x128xf32>
    %11 = vector.extract_strided_slice %1 {offsets = [0, 1], sizes = [256, 1], strides = [1, 1]} : vector<256x8xf32> to vector<256x1xf32>
    %12 = vector.extract_strided_slice %0 {offsets = [1, 0], sizes = [1, 128], strides = [1, 1]} : vector<4x128xf32> to vector<1x128xf32>
    %13 = vector.broadcast %11 : vector<256x1xf32> to vector<256x128xf32>
    %14 = vector.broadcast %12 : vector<1x128xf32> to vector<256x128xf32>
    %15 = arith.mulf %13, %14 : vector<256x128xf32>
    %16 = arith.addf %10, %15 : vector<256x128xf32>
    %17 = vector.extract_strided_slice %1 {offsets = [0, 2], sizes = [256, 1], strides = [1, 1]} : vector<256x8xf32> to vector<256x1xf32>
    %18 = vector.extract_strided_slice %0 {offsets = [2, 0], sizes = [1, 128], strides = [1, 1]} : vector<4x128xf32> to vector<1x128xf32>
    %19 = vector.broadcast %17 : vector<256x1xf32> to vector<256x128xf32>
    %20 = vector.broadcast %18 : vector<1x128xf32> to vector<256x128xf32>
    %21 = arith.mulf %19, %20 : vector<256x128xf32>
    %22 = arith.addf %16, %21 : vector<256x128xf32>
    %23 = vector.extract_strided_slice %1 {offsets = [0, 3], sizes = [256, 1], strides = [1, 1]} : vector<256x8xf32> to vector<256x1xf32>
    %24 = vector.extract_strided_slice %0 {offsets = [3, 0], sizes = [1, 128], strides = [1, 1]} : vector<4x128xf32> to vector<1x128xf32>
    %25 = vector.broadcast %23 : vector<256x1xf32> to vector<256x128xf32>
    %26 = vector.broadcast %24 : vector<1x128xf32> to vector<256x128xf32>
    %27 = arith.mulf %25, %26 : vector<256x128xf32>
    %28 = arith.addf %22, %27 : vector<256x128xf32>
    %cst = arith.constant 0.000000e+00 : f32
    %29 = vector.broadcast %cst : f32 to vector<256x128xf32>
    %30 = arith.cmpf ogt, %28, %29 : vector<256x128xf32>
    %cst_3 = arith.constant 0.00999999977 : f32
    %31 = vector.broadcast %cst_3 : f32 to vector<256x128xf32>
    %32 = arith.mulf %31, %28 : vector<256x128xf32>
    %33 = arith.select %30, %28, %32 : vector<256x128xi1>, vector<256x128xf32>
    %c0_4 = arith.constant 0 : index
    %c0_5 = arith.constant 0 : index
    %34 = vector.load %arg2[%c0_4, %c0_5] : memref<264x256xbf16, #tpu.memory_space<vmem>>, vector<256x256xbf16>
    %35 = arith.truncf %33 : vector<256x128xf32> to vector<256x128xbf16>
    %cst_6 = arith.constant dense<0.000000e+00> : vector<256x128xf32>
    %36 = tpu.matmul %34, %35, %cst_6 {dimension_numbers = #tpu.dot_dimension_numbers<[1], [0], [0], [1], [0, 0, 1, 1], [], []>} : vector<256x256xbf16>, vector<256x128xbf16>, vector<256x128xf32> -> vector<256x128xf32>
    %37 = vector.extract_strided_slice %1 {offsets = [0, 5], sizes = [256, 1], strides = [1, 1]} : vector<256x8xf32> to vector<256x1xf32>
    %38 = vector.broadcast %37 : vector<256x1xf32> to vector<256x128xf32>
    %39 = arith.addf %36, %38 : vector<256x128xf32>
    %cst_7 = arith.constant 0.000000e+00 : f32
    %40 = vector.broadcast %cst_7 : f32 to vector<256x128xf32>
    %41 = arith.cmpf ogt, %39, %40 : vector<256x128xf32>
    %cst_8 = arith.constant 0.00999999977 : f32
    %42 = vector.broadcast %cst_8 : f32 to vector<256x128xf32>
    %43 = arith.mulf %42, %39 : vector<256x128xf32>
    %44 = arith.select %41, %39, %43 : vector<256x128xi1>, vector<256x128xf32>
    %c256 = arith.constant 256 : index
    %c0_9 = arith.constant 0 : index
    %45 = vector.load %arg2[%c256, %c0_9] : memref<264x256xbf16, #tpu.memory_space<vmem>>, vector<8x256xbf16>
    %46 = arith.truncf %44 : vector<256x128xf32> to vector<256x128xbf16>
    %cst_10 = arith.constant dense<0.000000e+00> : vector<8x128xf32>
    %47 = tpu.matmul %45, %46, %cst_10 {dimension_numbers = #tpu.dot_dimension_numbers<[1], [0], [0], [1], [0, 0, 1, 1], [], []>} : vector<8x256xbf16>, vector<256x128xbf16>, vector<8x128xf32> -> vector<8x128xf32>
    %48 = vector.extract_strided_slice %1 {offsets = [0, 6], sizes = [8, 1], strides = [1, 1]} : vector<256x8xf32> to vector<8x1xf32>
    %49 = vector.broadcast %48 : vector<8x1xf32> to vector<8x128xf32>
    %50 = arith.addf %47, %49 : vector<8x128xf32>
    %c0_11 = arith.constant 0 : index
    %c0_12 = arith.constant 0 : index
    %51 = vector.load %arg4[%c0_11, %c0_12] : memref<8x128xf32, #tpu.memory_space<vmem>>, vector<8x128xf32>
    tpu.vector_store %arg4[%c0_11, %c0_12], %50 {strides = array<i32>} : memref<8x128xf32, #tpu.memory_space<vmem>>, vector<8x128xf32>,
    return
  }
  func.func @transform_0(%arg0: i32) -> (i32, i32) {
    %c0_i32 = arith.constant 0 : i32
    %c0_i32_0 = arith.constant 0 : i32
    return %c0_i32, %arg0 : i32, i32
  }
  func.func @transform_1(%arg0: i32) -> (i32, i32) {
    %c0_i32 = arith.constant 0 : i32
    %c0_i32_0 = arith.constant 0 : i32
    %c0_i32_1 = arith.constant 0 : i32
    return %c0_i32, %c0_i32_0 : i32, i32
  }
  func.func @transform_2(%arg0: i32) -> (i32, i32) {
    %c0_i32 = arith.constant 0 : i32
    %c0_i32_0 = arith.constant 0 : i32
    %c0_i32_1 = arith.constant 0 : i32
    return %c0_i32, %c0_i32_0 : i32, i32
  }
  func.func @transform_3(%arg0: i32) -> (i32, i32) {
    %c0_i32 = arith.constant 0 : i32
    %c0_i32_0 = arith.constant 0 : i32
    return %c0_i32, %arg0 : i32, i32
  }
}

</mosaic_0001>

<llo_original>
// kernel: tpu_custom_call.1
$region0: #{tpu_custom_call.1}
  #allocation0 [shape = 'u32[]', space=smem, size = 0x4, offset = 0x4, fixed_abs, tag = 'smem constant byte address 0x4 - core index']
  #allocation1 [shape = 'u32[144,128]{1,0:T(1,128)}', space=vmem, size = 0x12000, scoped, tag = 'internal scratch']
  %s0 = inlined_call_operand.vmem [shape: f32[4,128], index: 0, kind: input, shape index: {}]
  %s1 = inlined_call_operand.vmem [shape: bf16[264,256], index: 1, kind: input, shape index: {}]
  %s2 = inlined_call_operand.vmem [shape: f32[256,8], index: 2, kind: input, shape index: {}]
  %s3 = inlined_call_operand.hbm [shape: f32[8,128], index: 3, kind: output, shape index: {}]
  %s4 = sld [smem:[#allocation0]]
  $region22: #{tpu_custom_call.1} parent=0
    _
  %s6 = ssub.s32 1, %s4
  %s7 = scalar_select 0, %s6, %s4
  $region1: #{tpu_custom_call.1} parent=0
    #allocation2 [shape = 'u8[4096]{0}', space=vmem, size = 0x1000, scoped, tag = 'output window, operand 0, single buffered']
    #allocation3 [shape = 's32[1]{0}', space=sflag, size = 0x4, scoped, tag = 'scoped memory for tpu_custom_call.1']
    %8 = vsyncpa [#allocation3], 0
    // Predicated region
    $region2: #{tpu_custom_call.1} parent=1 // pred_check
      _
    $region3: #{tpu_custom_call.1} parent=1 // pred_check_branch
      %10 = sbr.rel (0) target = $region5
    $region4: #{tpu_custom_call.1} parent=1 // pred_region
      _
    $region5: #{tpu_custom_call.1} parent=1 // pred_fallthru
      _
    // Predicated region
    $region6: #{tpu_custom_call.1} parent=1 // pred_check
      _
    $region7: #{tpu_custom_call.1} parent=1 // pred_check_branch
      %12 = sbr.rel (0) target = $region9
    $region8: #{tpu_custom_call.1} parent=1 // pred_region
      _
    $region9: #{tpu_custom_call.1} parent=1 // pred_fallthru
      _
    // Predicated region
    $region10: #{tpu_custom_call.1} parent=1 // pred_check
      _
    $region11: #{tpu_custom_call.1} parent=1 // pred_check_branch
      %14 = sbr.rel (0) target = $region13
    $region12: #{tpu_custom_call.1} parent=1 // pred_region
      _
    $region13: #{tpu_custom_call.1} parent=1 // pred_fallthru
      _
    %v16 = vld [vmem:[%s0] sm:$0xf]
    %v17 = vld [vmem:[%s2] sm:$0xff]
    %v18 = vld [vmem:[%s2 + $0x8] sm:$0xff]
    %v19 = vld [vmem:[%s2 + $0x10] sm:$0xff]
    %v20 = vld [vmem:[%s2 + $0x18] sm:$0xff]
    %v21 = vld [vmem:[%s2 + $0x20] sm:$0xff]
    %v22 = vld [vmem:[%s2 + $0x28] sm:$0xff]
    %v23 = vld [vmem:[%s2 + $0x30] sm:$0xff]
    %v24 = vld [vmem:[%s2 + $0x38] sm:$0xff]
    %v25 = vld [vmem:[%s2 + $0x40] sm:$0xff]
    %v26 = vld [vmem:[%s2 + $0x48] sm:$0xff]
    %v27 = vld [vmem:[%s2 + $0x50] sm:$0xff]
    %v28 = vld [vmem:[%s2 + $0x58] sm:$0xff]
    %v29 = vld [vmem:[%s2 + $0x60] sm:$0xff]
    %v30 = vld [vmem:[%s2 + $0x68] sm:$0xff]
    %v31 = vld [vmem:[%s2 + $0x70] sm:$0xff]
    %v32 = vld [vmem:[%s2 + $0x78] sm:$0xff]
    %v33 = vld [vmem:[%s2 + $0x80] sm:$0xff]
    %v34 = vld [vmem:[%s2 + $0x88] sm:$0xff]
    %v35 = vld [vmem:[%s2 + $0x90] sm:$0xff]
    %v36 = vld [vmem:[%s2 + $0x98] sm:$0xff]
    %v37 = vld [vmem:[%s2 + $0xa0] sm:$0xff]
    %v38 = vld [vmem:[%s2 + $0xa8] sm:$0xff]
    %v39 = vld [vmem:[%s2 + $0xb0] sm:$0xff]
    %v40 = vld [vmem:[%s2 + $0xb8] sm:$0xff]
    %v41 = vld [vmem:[%s2 + $0xc0] sm:$0xff]
    %v42 = vld [vmem:[%s2 + $0xc8] sm:$0xff]
    %v43 = vld [vmem:[%s2 + $0xd0] sm:$0xff]
    %v44 = vld [vmem:[%s2 + $0xd8] sm:$0xff]
    %v45 = vld [vmem:[%s2 + $0xe0] sm:$0xff]
    %v46 = vld [vmem:[%s2 + $0xe8] sm:$0xff]
    %v47 = vld [vmem:[%s2 + $0xf0] sm:$0xff]
    %v48 = vld [vmem:[%s2 + $0xf8] sm:$0xff]
    %50 = vset.pattern.permute.xlu0 4
    %51 = vperm.xlu0 %50, %v17
    %v52 = vpop.permute.xlu0 %51
    %55 = vset.pattern.permute.xlu0 4
    %56 = vperm.xlu0 %55, %v18
    %v57 = vpop.permute.xlu0 %56
    %60 = vset.pattern.permute.xlu0 4
    %61 = vperm.xlu0 %60, %v19
    %v62 = vpop.permute.xlu0 %61
    %65 = vset.pattern.permute.xlu0 4
    %66 = vperm.xlu0 %65, %v20
    %v67 = vpop.permute.xlu0 %66
    %70 = vset.pattern.permute.xlu0 4
    %71 = vperm.xlu0 %70, %v21
    %v72 = vpop.permute.xlu0 %71
    %75 = vset.pattern.permute.xlu0 4
    %76 = vperm.xlu0 %75, %v22
    %v77 = vpop.permute.xlu0 %76
    %80 = vset.pattern.permute.xlu0 4
    %81 = vperm.xlu0 %80, %v23
    %v82 = vpop.permute.xlu0 %81
    %85 = vset.pattern.permute.xlu0 4
    %86 = vperm.xlu0 %85, %v24
    %v87 = vpop.permute.xlu0 %86
    %90 = vset.pattern.permute.xlu0 4
    %91 = vperm.xlu0 %90, %v25
    %v92 = vpop.permute.xlu0 %91
    %95 = vset.pattern.permute.xlu0 4
    %96 = vperm.xlu0 %95, %v26
    %v97 = vpop.permute.xlu0 %96
    %100 = vset.pattern.permute.xlu0 4
    %101 = vperm.xlu0 %100, %v27
    %v102 = vpop.permute.xlu0 %101
    %105 = vset.pattern.permute.xlu0 4
    %106 = vperm.xlu0 %105, %v28
    %v107 = vpop.permute.xlu0 %106
    %110 = vset.pattern.permute.xlu0 4
    %111 = vperm.xlu0 %110, %v29
    %v112 = vpop.permute.xlu0 %111
    %115 = vset.pattern.permute.xlu0 4
    %116 = vperm.xlu0 %115, %v30
    %v117 = vpop.permute.xlu0 %116
    %120 = vset.pattern.permute.xlu0 4
    %121 = vperm.xlu0 %120, %v31
    %v122 = vpop.permute.xlu0 %121
    %125 = vset.pattern.permute.xlu0 4
    %126 = vperm.xlu0 %125, %v32
    %v127 = vpop.permute.xlu0 %126
    %130 = vset.pattern.permute.xlu0 4
    %131 = vperm.xlu0 %130, %v33
    %v132 = vpop.permute.xlu0 %131
    %135 = vset.pattern.permute.xlu0 4
    %136 = vperm.xlu0 %135, %v34
    %v137 = vpop.permute.xlu0 %136
    %140 = vset.pattern.permute.xlu0 4
    %141 = vperm.xlu0 %140, %v35
    %v142 = vpop.permute.xlu0 %141
    %145 = vset.pattern.permute.xlu0 4
    %146 = vperm.xlu0 %145, %v36
    %v147 = vpop.permute.xlu0 %146
    %150 = vset.pattern.permute.xlu0 4
    %151 = vperm.xlu0 %150, %v37
    %v152 = vpop.permute.xlu0 %151
    %155 = vset.pattern.permute.xlu0 4
    %156 = vperm.xlu0 %155, %v38
    %v157 = vpop.permute.xlu0 %156
    %160 = vset.pattern.permute.xlu0 4
    %161 = vperm.xlu0 %160, %v39
    %v162 = vpop.permute.xlu0 %161
    %165 = vset.pattern.permute.xlu0 4
    %166 = vperm.xlu0 %165, %v40
    %v167 = vpop.permute.xlu0 %166
    %170 = vset.pattern.permute.xlu0 4
    %171 = vperm.xlu0 %170, %v41
    %v172 = vpop.permute.xlu0 %171
    %175 = vset.pattern.permute.xlu0 4
    %176 = vperm.xlu0 %175, %v42
    %v177 = vpop.permute.xlu0 %176
    %180 = vset.pattern.permute.xlu0 4
    %181 = vperm.xlu0 %180, %v43
    %v182 = vpop.permute.xlu0 %181
    %185 = vset.pattern.permute.xlu0 4
    %186 = vperm.xlu0 %185, %v44
    %v187 = vpop.permute.xlu0 %186
    %190 = vset.pattern.permute.xlu0 4
    %191 = vperm.xlu0 %190, %v45
    %v192 = vpop.permute.xlu0 %191
    %195 = vset.pattern.permute.xlu0 4
    %196 = vperm.xlu0 %195, %v46
    %v197 = vpop.permute.xlu0 %196
    %200 = vset.pattern.permute.xlu0 4
    %201 = vperm.xlu0 %200, %v47
    %v202 = vpop.permute.xlu0 %201
    %205 = vset.pattern.permute.xlu0 4
    %206 = vperm.xlu0 %205, %v48
    %v207 = vpop.permute.xlu0 %206
    %209 = vset.pattern.permute.xlu0 0
    %210 = vperm.xlu0 %209, %v17
    %v211 = vpop.permute.xlu0 %210
    %213 = vset.pattern.permute.xlu0 0
    %214 = vperm.xlu0 %213, %v18
    %v215 = vpop.permute.xlu0 %214
    %217 = vset.pattern.permute.xlu0 0
    %218 = vperm.xlu0 %217, %v19
    %v219 = vpop.permute.xlu0 %218
    %221 = vset.pattern.permute.xlu0 0
    %222 = vperm.xlu0 %221, %v20
    %v223 = vpop.permute.xlu0 %222
    %225 = vset.pattern.permute.xlu0 0
    %226 = vperm.xlu0 %225, %v21
    %v227 = vpop.permute.xlu0 %226
    %229 = vset.pattern.permute.xlu0 0
    %230 = vperm.xlu0 %229, %v22
    %v231 = vpop.permute.xlu0 %230
    %233 = vset.pattern.permute.xlu0 0
    %234 = vperm.xlu0 %233, %v23
    %v235 = vpop.permute.xlu0 %234
    %237 = vset.pattern.permute.xlu0 0
    %238 = vperm.xlu0 %237, %v24
    %v239 = vpop.permute.xlu0 %238
    %241 = vset.pattern.permute.xlu0 0
    %242 = vperm.xlu0 %241, %v25
    %v243 = vpop.permute.xlu0 %242
    %245 = vset.pattern.permute.xlu0 0
    %246 = vperm.xlu0 %245, %v26
    %v247 = vpop.permute.xlu0 %246
    %249 = vset.pattern.permute.xlu0 0
    %250 = vperm.xlu0 %249, %v27
    %v251 = vpop.permute.xlu0 %250
    %253 = vset.pattern.permute.xlu0 0
    %254 = vperm.xlu0 %253, %v28
    %v255 = vpop.permute.xlu0 %254
    %257 = vset.pattern.permute.xlu0 0
    %258 = vperm.xlu0 %257, %v29
    %v259 = vpop.permute.xlu0 %258
    %261 = vset.pattern.permute.xlu0 0
    %262 = vperm.xlu0 %261, %v30
    %v263 = vpop.permute.xlu0 %262
    %265 = vset.pattern.permute.xlu0 0
    %266 = vperm.xlu0 %265, %v31
    %v267 = vpop.permute.xlu0 %266
    %269 = vset.pattern.permute.xlu0 0
    %270 = vperm.xlu0 %269, %v32
    %v271 = vpop.permute.xlu0 %270
    %273 = vset.pattern.permute.xlu0 0
    %274 = vperm.xlu0 %273, %v33
    %v275 = vpop.permute.xlu0 %274
    %277 = vset.pattern.permute.xlu0 0
    %278 = vperm.xlu0 %277, %v34
    %v279 = vpop.permute.xlu0 %278
    %281 = vset.pattern.permute.xlu0 0
    %282 = vperm.xlu0 %281, %v35
    %v283 = vpop.permute.xlu0 %282
    %285 = vset.pattern.permute.xlu0 0
    %286 = vperm.xlu0 %285, %v36
    %v287 = vpop.permute.xlu0 %286
    %289 = vset.pattern.permute.xlu0 0
    %290 = vperm.xlu0 %289, %v37
    %v291 = vpop.permute.xlu0 %290
    %293 = vset.pattern.permute.xlu0 0
    %294 = vperm.xlu0 %293, %v38
    %v295 = vpop.permute.xlu0 %294
    %297 = vset.pattern.permute.xlu0 0
    %298 = vperm.xlu0 %297, %v39
    %v299 = vpop.permute.xlu0 %298
    %301 = vset.pattern.permute.xlu0 0
    %302 = vperm.xlu0 %301, %v40
    %v303 = vpop.permute.xlu0 %302
    %305 = vset.pattern.permute.xlu0 0
    %306 = vperm.xlu0 %305, %v41
    %v307 = vpop.permute.xlu0 %306
    %309 = vset.pattern.permute.xlu0 0
    %310 = vperm.xlu0 %309, %v42
    %v311 = vpop.permute.xlu0 %310
    %313 = vset.pattern.permute.xlu0 0
    %314 = vperm.xlu0 %313, %v43
    %v315 = vpop.permute.xlu0 %314
    %317 = vset.pattern.permute.xlu0 0
    %318 = vperm.xlu0 %317, %v44
    %v319 = vpop.permute.xlu0 %318
    %321 = vset.pattern.permute.xlu0 0
    %322 = vperm.xlu0 %321, %v45
    %v323 = vpop.permute.xlu0 %322
    %325 = vset.pattern.permute.xlu0 0
    %326 = vperm.xlu0 %325, %v46
    %v327 = vpop.permute.xlu0 %326
    %329 = vset.pattern.permute.xlu0 0
    %330 = vperm.xlu0 %329, %v47
    %v331 = vpop.permute.xlu0 %330
    %333 = vset.pattern.permute.xlu0 0
    %334 = vperm.xlu0 %333, %v48
    %v335 = vpop.permute.xlu0 %334
    %v337 = vlaneseq
    %v338 = vshrl.u32 %v337, 7
    %v339 = vsub.s32 0, %v338
    %v340 = vrot.slane %v16, %v339
    %v341 = vmul.f32 %v211, %v340
    %v342 = vmul.f32 %v215, %v340
    %v343 = vmul.f32 %v219, %v340
    %v344 = vmul.f32 %v223, %v340
    %v345 = vmul.f32 %v227, %v340
    %v346 = vmul.f32 %v231, %v340
    %v347 = vmul.f32 %v235, %v340
    %v348 = vmul.f32 %v239, %v340
    %v349 = vmul.f32 %v243, %v340
    %v350 = vmul.f32 %v247, %v340
    %v351 = vmul.f32 %v251, %v340
    %v352 = vmul.f32 %v255, %v340
    %v353 = vmul.f32 %v259, %v340
    %v354 = vmul.f32 %v263, %v340
    %v355 = vmul.f32 %v267, %v340
    %v356 = vmul.f32 %v271, %v340
    %v357 = vmul.f32 %v275, %v340
    %v358 = vmul.f32 %v279, %v340
    %v359 = vmul.f32 %v283, %v340
    %v360 = vmul.f32 %v287, %v340
    %v361 = vmul.f32 %v291, %v340
    %v362 = vmul.f32 %v295, %v340
    %v363 = vmul.f32 %v299, %v340
    %v364 = vmul.f32 %v303, %v340
    %v365 = vmul.f32 %v307, %v340
    %v366 = vmul.f32 %v311, %v340
    %v367 = vmul.f32 %v315, %v340
    %v368 = vmul.f32 %v319, %v340
    %v369 = vmul.f32 %v323, %v340
    %v370 = vmul.f32 %v327, %v340
    %v371 = vmul.f32 %v331, %v340
    %v372 = vmul.f32 %v335, %v340
    %v373 = vadd.f32 %v52, %v341
    %v374 = vadd.f32 %v57, %v342
    %v375 = vadd.f32 %v62, %v343
    %v376 = vadd.f32 %v67, %v344
    %v377 = vadd.f32 %v72, %v345
    %v378 = vadd.f32 %v77, %v346
    %v379 = vadd.f32 %v82, %v347
    %v380 = vadd.f32 %v87, %v348
    %v381 = vadd.f32 %v92, %v349
    %v382 = vadd.f32 %v97, %v350
    %v383 = vadd.f32 %v102, %v351
    %v384 = vadd.f32 %v107, %v352
    %v385 = vadd.f32 %v112, %v353
    %v386 = vadd.f32 %v117, %v354
    %v387 = vadd.f32 %v122, %v355
    %v388 = vadd.f32 %v127, %v356
    %v389 = vadd.f32 %v132, %v357
    %v390 = vadd.f32 %v137, %v358
    %v391 = vadd.f32 %v142, %v359
    %v392 = vadd.f32 %v147, %v360
    %v393 = vadd.f32 %v152, %v361
    %v394 = vadd.f32 %v157, %v362
    %v395 = vadd.f32 %v162, %v363
    %v396 = vadd.f32 %v167, %v364
    %v397 = vadd.f32 %v172, %v365
    %v398 = vadd.f32 %v177, %v366
    %v399 = vadd.f32 %v182, %v367
    %v400 = vadd.f32 %v187, %v368
    %v401 = vadd.f32 %v192, %v369
    %v402 = vadd.f32 %v197, %v370
    %v403 = vadd.f32 %v202, %v371
    %v404 = vadd.f32 %v207, %v372
    %405 = vset.pattern.permute.xlu0 1
    %406 = vperm.xlu0 %405, %v17
    %v407 = vpop.permute.xlu0 %406
    %409 = vset.pattern.permute.xlu0 1
    %410 = vperm.xlu0 %409, %v18
    %v411 = vpop.permute.xlu0 %410
    %413 = vset.pattern.permute.xlu0 1
    %414 = vperm.xlu0 %413, %v19
    %v415 = vpop.permute.xlu0 %414
    %417 = vset.pattern.permute.xlu0 1
    %418 = vperm.xlu0 %417, %v20
    %v419 = vpop.permute.xlu0 %418
    %421 = vset.pattern.permute.xlu0 1
    %422 = vperm.xlu0 %421, %v21
    %v423 = vpop.permute.xlu0 %422
    %425 = vset.pattern.permute.xlu0 1
    %426 = vperm.xlu0 %425, %v22
    %v427 = vpop.permute.xlu0 %426
    %429 = vset.pattern.permute.xlu0 1
    %430 = vperm.xlu0 %429, %v23
    %v431 = vpop.permute.xlu0 %430
    %433 = vset.pattern.permute.xlu0 1
    %434 = vperm.xlu0 %433, %v24
    %v435 = vpop.permute.xlu0 %434
    %437 = vset.pattern.permute.xlu0 1
    %438 = vperm.xlu0 %437, %v25
    %v439 = vpop.permute.xlu0 %438
    %441 = vset.pattern.permute.xlu0 1
    %442 = vperm.xlu0 %441, %v26
    %v443 = vpop.permute.xlu0 %442
    %445 = vset.pattern.permute.xlu0 1
    %446 = vperm.xlu0 %445, %v27
    %v447 = vpop.permute.xlu0 %446
    %449 = vset.pattern.permute.xlu0 1
    %450 = vperm.xlu0 %449, %v28
    %v451 = vpop.permute.xlu0 %450
    %453 = vset.pattern.permute.xlu0 1
    %454 = vperm.xlu0 %453, %v29
    %v455 = vpop.permute.xlu0 %454
    %457 = vset.pattern.permute.xlu0 1
    %458 = vperm.xlu0 %457, %v30
    %v459 = vpop.permute.xlu0 %458
    %461 = vset.pattern.permute.xlu0 1
    %462 = vperm.xlu0 %461, %v31
    %v463 = vpop.permute.xlu0 %462
    %465 = vset.pattern.permute.xlu0 1
    %466 = vperm.xlu0 %465, %v32
    %v467 = vpop.permute.xlu0 %466
    %469 = vset.pattern.permute.xlu0 1
    %470 = vperm.xlu0 %469, %v33
    %v471 = vpop.permute.xlu0 %470
    %473 = vset.pattern.permute.xlu0 1
    %474 = vperm.xlu0 %473, %v34
    %v475 = vpop.permute.xlu0 %474
    %477 = vset.pattern.permute.xlu0 1
    %478 = vperm.xlu0 %477, %v35
    %v479 = vpop.permute.xlu0 %478
    %481 = vset.pattern.permute.xlu0 1
    %482 = vperm.xlu0 %481, %v36
    %v483 = vpop.permute.xlu0 %482
    %485 = vset.pattern.permute.xlu0 1
    %486 = vperm.xlu0 %485, %v37
    %v487 = vpop.permute.xlu0 %486
    %489 = vset.pattern.permute.xlu0 1
    %490 = vperm.xlu0 %489, %v38
    %v491 = vpop.permute.xlu0 %490
    %493 = vset.pattern.permute.xlu0 1
    %494 = vperm.xlu0 %493, %v39
    %v495 = vpop.permute.xlu0 %494
    %497 = vset.pattern.permute.xlu0 1
    %498 = vperm.xlu0 %497, %v40
    %v499 = vpop.permute.xlu0 %498
    %501 = vset.pattern.permute.xlu0 1
    %502 = vperm.xlu0 %501, %v41
    %v503 = vpop.permute.xlu0 %502
    %505 = vset.pattern.permute.xlu0 1
    %506 = vperm.xlu0 %505, %v42
    %v507 = vpop.permute.xlu0 %506
    %509 = vset.pattern.permute.xlu0 1
    %510 = vperm.xlu0 %509, %v43
    %v511 = vpop.permute.xlu0 %510
    %513 = vset.pattern.permute.xlu0 1
    %514 = vperm.xlu0 %513, %v44
    %v515 = vpop.permute.xlu0 %514
    %517 = vset.pattern.permute.xlu0 1
    %518 = vperm.xlu0 %517, %v45
    %v519 = vpop.permute.xlu0 %518
    %521 = vset.pattern.permute.xlu0 1
    %522 = vperm.xlu0 %521, %v46
    %v523 = vpop.permute.xlu0 %522
    %525 = vset.pattern.permute.xlu0 1
    %526 = vperm.xlu0 %525, %v47
    %v527 = vpop.permute.xlu0 %526
    %529 = vset.pattern.permute.xlu0 1
    %530 = vperm.xlu0 %529, %v48
    %v531 = vpop.permute.xlu0 %530
    %v533 = vlaneseq
    %v534 = vshrl.u32 %v533, 7
    %v535 = vsub.s32 1, %v534
    %v536 = vrot.slane %v16, %v535
    %v537 = vmul.f32 %v407, %v536
    %v538 = vmul.f32 %v411, %v536
    %v539 = vmul.f32 %v415, %v536
    %v540 = vmul.f32 %v419, %v536
    %v541 = vmul.f32 %v423, %v536
    %v542 = vmul.f32 %v427, %v536
    %v543 = vmul.f32 %v431, %v536
    %v544 = vmul.f32 %v435, %v536
    %v545 = vmul.f32 %v439, %v536
    %v546 = vmul.f32 %v443, %v536
    %v547 = vmul.f32 %v447, %v536
    %v548 = vmul.f32 %v451, %v536
    %v549 = vmul.f32 %v455, %v536
    %v550 = vmul.f32 %v459, %v536
    %v551 = vmul.f32 %v463, %v536
    %v552 = vmul.f32 %v467, %v536
    %v553 = vmul.f32 %v471, %v536
    %v554 = vmul.f32 %v475, %v536
    %v555 = vmul.f32 %v479, %v536
    %v556 = vmul.f32 %v483, %v536
    %v557 = vmul.f32 %v487, %v536
    %v558 = vmul.f32 %v491, %v536
    %v559 = vmul.f32 %v495, %v536
    %v560 = vmul.f32 %v499, %v536
    %v561 = vmul.f32 %v503, %v536
    %v562 = vmul.f32 %v507, %v536
    %v563 = vmul.f32 %v511, %v536
    %v564 = vmul.f32 %v515, %v536
    %v565 = vmul.f32 %v519, %v536
    %v566 = vmul.f32 %v523, %v536
    %v567 = vmul.f32 %v527, %v536
    %v568 = vmul.f32 %v531, %v536
    %v569 = vadd.f32 %v373, %v537
    %v570 = vadd.f32 %v374, %v538
    %v571 = vadd.f32 %v375, %v539
    %v572 = vadd.f32 %v376, %v540
    %v573 = vadd.f32 %v377, %v541
    %v574 = vadd.f32 %v378, %v542
    %v575 = vadd.f32 %v379, %v543
    %v576 = vadd.f32 %v380, %v544
    %v577 = vadd.f32 %v381, %v545
    %v578 = vadd.f32 %v382, %v546
    %v579 = vadd.f32 %v383, %v547
    %v580 = vadd.f32 %v384, %v548
    %v581 = vadd.f32 %v385, %v549
    %v582 = vadd.f32 %v386, %v550
    %v583 = vadd.f32 %v387, %v551
    %v584 = vadd.f32 %v388, %v552
    %v585 = vadd.f32 %v389, %v553
    %v586 = vadd.f32 %v390, %v554
    %v587 = vadd.f32 %v391, %v555
    %v588 = vadd.f32 %v392, %v556
    %v589 = vadd.f32 %v393, %v557
    %v590 = vadd.f32 %v394, %v558
    %v591 = vadd.f32 %v395, %v559
    %v592 = vadd.f32 %v396, %v560
    %v593 = vadd.f32 %v397, %v561
    %v594 = vadd.f32 %v398, %v562
    %v595 = vadd.f32 %v399, %v563
    %v596 = vadd.f32 %v400, %v564
    %v597 = vadd.f32 %v401, %v565
    %v598 = vadd.f32 %v402, %v566
    %v599 = vadd.f32 %v403, %v567
    %v600 = vadd.f32 %v404, %v568
    %601 = vset.pattern.permute.xlu0 2
    %602 = vperm.xlu0 %601, %v17
    %v603 = vpop.permute.xlu0 %602
    %605 = vset.pattern.permute.xlu0 2
    %606 = vperm.xlu0 %605, %v18
    %v607 = vpop.permute.xlu0 %606
    %609 = vset.pattern.permute.xlu0 2
    %610 = vperm.xlu0 %609, %v19
    %v611 = vpop.permute.xlu0 %610
    %613 = vset.pattern.permute.xlu0 2
    %614 = vperm.xlu0 %613, %v20
    %v615 = vpop.permute.xlu0 %614
    %617 = vset.pattern.permute.xlu0 2
    %618 = vperm.xlu0 %617, %v21
    %v619 = vpop.permute.xlu0 %618
    %621 = vset.pattern.permute.xlu0 2
    %622 = vperm.xlu0 %621, %v22
    %v623 = vpop.permute.xlu0 %622
    %625 = vset.pattern.permute.xlu0 2
    %626 = vperm.xlu0 %625, %v23
    %v627 = vpop.permute.xlu0 %626
    %629 = vset.pattern.permute.xlu0 2
    %630 = vperm.xlu0 %629, %v24
    %v631 = vpop.permute.xlu0 %630
    %633 = vset.pattern.permute.xlu0 2
    %634 = vperm.xlu0 %633, %v25
    %v635 = vpop.permute.xlu0 %634
    %637 = vset.pattern.permute.xlu0 2
    %638 = vperm.xlu0 %637, %v26
    %v639 = vpop.permute.xlu0 %638
    %641 = vset.pattern.permute.xlu0 2
    %642 = vperm.xlu0 %641, %v27
    %v643 = vpop.permute.xlu0 %642
    %645 = vset.pattern.permute.xlu0 2
    %646 = vperm.xlu0 %645, %v28
    %v647 = vpop.permute.xlu0 %646
    %649 = vset.pattern.permute.xlu0 2
    %650 = vperm.xlu0 %649, %v29
    %v651 = vpop.permute.xlu0 %650
    %653 = vset.pattern.permute.xlu0 2
    %654 = vperm.xlu0 %653, %v30
    %v655 = vpop.permute.xlu0 %654
    %657 = vset.pattern.permute.xlu0 2
    %658 = vperm.xlu0 %657, %v31
    %v659 = vpop.permute.xlu0 %658
    %661 = vset.pattern.permute.xlu0 2
    %662 = vperm.xlu0 %661, %v32
    %v663 = vpop.permute.xlu0 %662
    %665 = vset.pattern.permute.xlu0 2
    %666 = vperm.xlu0 %665, %v33
    %v667 = vpop.permute.xlu0 %666
    %669 = vset.pattern.permute.xlu0 2
    %670 = vperm.xlu0 %669, %v34
    %v671 = vpop.permute.xlu0 %670
    %673 = vset.pattern.permute.xlu0 2
    %674 = vperm.xlu0 %673, %v35
    %v675 = vpop.permute.xlu0 %674
    %677 = vset.pattern.permute.xlu0 2
    %678 = vperm.xlu0 %677, %v36
    %v679 = vpop.permute.xlu0 %678
    %681 = vset.pattern.permute.xlu0 2
    %682 = vperm.xlu0 %681, %v37
    %v683 = vpop.permute.xlu0 %682
    %685 = vset.pattern.permute.xlu0 2
    %686 = vperm.xlu0 %685, %v38
    %v687 = vpop.permute.xlu0 %686
    %689 = vset.pattern.permute.xlu0 2
    %690 = vperm.xlu0 %689, %v39
    %v691 = vpop.permute.xlu0 %690
    %693 = vset.pattern.permute.xlu0 2
    %694 = vperm.xlu0 %693, %v40
    %v695 = vpop.permute.xlu0 %694
    %697 = vset.pattern.permute.xlu0 2
    %698 = vperm.xlu0 %697, %v41
    %v699 = vpop.permute.xlu0 %698
    %701 = vset.pattern.permute.xlu0 2
    %702 = vperm.xlu0 %701, %v42
    %v703 = vpop.permute.xlu0 %702
    %705 = vset.pattern.permute.xlu0 2
    %706 = vperm.xlu0 %705, %v43
    %v707 = vpop.permute.xlu0 %706
    %709 = vset.pattern.permute.xlu0 2
    %710 = vperm.xlu0 %709, %v44
    %v711 = vpop.permute.xlu0 %710
    %713 = vset.pattern.permute.xlu0 2
    %714 = vperm.xlu0 %713, %v45
    %v715 = vpop.permute.xlu0 %714
    %717 = vset.pattern.permute.xlu0 2
    %718 = vperm.xlu0 %717, %v46
    %v719 = vpop.permute.xlu0 %718
    %721 = vset.pattern.permute.xlu0 2
    %722 = vperm.xlu0 %721, %v47
    %v723 = vpop.permute.xlu0 %722
    %725 = vset.pattern.permute.xlu0 2
    %726 = vperm.xlu0 %725, %v48
    %v727 = vpop.permute.xlu0 %726
    %v729 = vlaneseq
    %v730 = vshrl.u32 %v729, 7
    %v731 = vsub.s32 2, %v730
    %v732 = vrot.slane %v16, %v731
    %v733 = vmul.f32 %v603, %v732
    %v734 = vmul.f32 %v607, %v732
    %v735 = vmul.f32 %v611, %v732
    %v736 = vmul.f32 %v615, %v732
    %v737 = vmul.f32 %v619, %v732
    %v738 = vmul.f32 %v623, %v732
    %v739 = vmul.f32 %v627, %v732
    %v740 = vmul.f32 %v631, %v732
    %v741 = vmul.f32 %v635, %v732
    %v742 = vmul.f32 %v639, %v732
    %v743 = vmul.f32 %v643, %v732
    %v744 = vmul.f32 %v647, %v732
    %v745 = vmul.f32 %v651, %v732
    %v746 = vmul.f32 %v655, %v732
    %v747 = vmul.f32 %v659, %v732
    %v748 = vmul.f32 %v663, %v732
    %v749 = vmul.f32 %v667, %v732
    %v750 = vmul.f32 %v671, %v732
    %v751 = vmul.f32 %v675, %v732
    %v752 = vmul.f32 %v679, %v732
    %v753 = vmul.f32 %v683, %v732
    %v754 = vmul.f32 %v687, %v732
    %v755 = vmul.f32 %v691, %v732
    %v756 = vmul.f32 %v695, %v732
    %v757 = vmul.f32 %v699, %v732
    %v758 = vmul.f32 %v703, %v732
    %v759 = vmul.f32 %v707, %v732
    %v760 = vmul.f32 %v711, %v732
    %v761 = vmul.f32 %v715, %v732
    %v762 = vmul.f32 %v719, %v732
    %v763 = vmul.f32 %v723, %v732
    %v764 = vmul.f32 %v727, %v732
    %v765 = vadd.f32 %v569, %v733
    %v766 = vadd.f32 %v570, %v734
    %v767 = vadd.f32 %v571, %v735
    %v768 = vadd.f32 %v572, %v736
    %v769 = vadd.f32 %v573, %v737
    %v770 = vadd.f32 %v574, %v738
    %v771 = vadd.f32 %v575, %v739
    %v772 = vadd.f32 %v576, %v740
    %v773 = vadd.f32 %v577, %v741
    %v774 = vadd.f32 %v578, %v742
    %v775 = vadd.f32 %v579, %v743
    %v776 = vadd.f32 %v580, %v744
    %v777 = vadd.f32 %v581, %v745
    %v778 = vadd.f32 %v582, %v746
    %v779 = vadd.f32 %v583, %v747
    %v780 = vadd.f32 %v584, %v748
    %v781 = vadd.f32 %v585, %v749
    %v782 = vadd.f32 %v586, %v750
    %v783 = vadd.f32 %v587, %v751
    %v784 = vadd.f32 %v588, %v752
    %v785 = vadd.f32 %v589, %v753
    %v786 = vadd.f32 %v590, %v754
    %v787 = vadd.f32 %v591, %v755
    %v788 = vadd.f32 %v592, %v756
    %v789 = vadd.f32 %v593, %v757
    %v790 = vadd.f32 %v594, %v758
    %v791 = vadd.f32 %v595, %v759
    %v792 = vadd.f32 %v596, %v760
    %v793 = vadd.f32 %v597, %v761
    %v794 = vadd.f32 %v598, %v762
    %v795 = vadd.f32 %v599, %v763
    %v796 = vadd.f32 %v600, %v764
    %797 = vset.pattern.permute.xlu0 3
    %798 = vperm.xlu0 %797, %v17
    %v799 = vpop.permute.xlu0 %798
    %801 = vset.pattern.permute.xlu0 3
    %802 = vperm.xlu0 %801, %v18
    %v803 = vpop.permute.xlu0 %802
    %805 = vset.pattern.permute.xlu0 3
    %806 = vperm.xlu0 %805, %v19
    %v807 = vpop.permute.xlu0 %806
    %809 = vset.pattern.permute.xlu0 3
    %810 = vperm.xlu0 %809, %v20
    %v811 = vpop.permute.xlu0 %810
    %813 = vset.pattern.permute.xlu0 3
    %814 = vperm.xlu0 %813, %v21
    %v815 = vpop.permute.xlu0 %814
    %817 = vset.pattern.permute.xlu0 3
    %818 = vperm.xlu0 %817, %v22
    %v819 = vpop.permute.xlu0 %818
    %821 = vset.pattern.permute.xlu0 3
    %822 = vperm.xlu0 %821, %v23
    %v823 = vpop.permute.xlu0 %822
    %825 = vset.pattern.permute.xlu0 3
    %826 = vperm.xlu0 %825, %v24
    %v827 = vpop.permute.xlu0 %826
    %829 = vset.pattern.permute.xlu0 3
    %830 = vperm.xlu0 %829, %v25
    %v831 = vpop.permute.xlu0 %830
    %833 = vset.pattern.permute.xlu0 3
    %834 = vperm.xlu0 %833, %v26
    %v835 = vpop.permute.xlu0 %834
    %837 = vset.pattern.permute.xlu0 3
    %838 = vperm.xlu0 %837, %v27
    %v839 = vpop.permute.xlu0 %838
    %841 = vset.pattern.permute.xlu0 3
    %842 = vperm.xlu0 %841, %v28
    %v843 = vpop.permute.xlu0 %842
    %845 = vset.pattern.permute.xlu0 3
    %846 = vperm.xlu0 %845, %v29
    %v847 = vpop.permute.xlu0 %846
    %849 = vset.pattern.permute.xlu0 3
    %850 = vperm.xlu0 %849, %v30
    %v851 = vpop.permute.xlu0 %850
    %853 = vset.pattern.permute.xlu0 3
    %854 = vperm.xlu0 %853, %v31
    %v855 = vpop.permute.xlu0 %854
    %857 = vset.pattern.permute.xlu0 3
    %858 = vperm.xlu0 %857, %v32
    %v859 = vpop.permute.xlu0 %858
    %861 = vset.pattern.permute.xlu0 3
    %862 = vperm.xlu0 %861, %v33
    %v863 = vpop.permute.xlu0 %862
    %865 = vset.pattern.permute.xlu0 3
    %866 = vperm.xlu0 %865, %v34
    %v867 = vpop.permute.xlu0 %866
    %869 = vset.pattern.permute.xlu0 3
    %870 = vperm.xlu0 %869, %v35
    %v871 = vpop.permute.xlu0 %870
    %873 = vset.pattern.permute.xlu0 3
    %874 = vperm.xlu0 %873, %v36
    %v875 = vpop.permute.xlu0 %874
    %877 = vset.pattern.permute.xlu0 3
    %878 = vperm.xlu0 %877, %v37
    %v879 = vpop.permute.xlu0 %878
    %881 = vset.pattern.permute.xlu0 3
    %882 = vperm.xlu0 %881, %v38
    %v883 = vpop.permute.xlu0 %882
    %885 = vset.pattern.permute.xlu0 3
    %886 = vperm.xlu0 %885, %v39
    %v887 = vpop.permute.xlu0 %886
    %889 = vset.pattern.permute.xlu0 3
    %890 = vperm.xlu0 %889, %v40
    %v891 = vpop.permute.xlu0 %890
    %893 = vset.pattern.permute.xlu0 3
    %894 = vperm.xlu0 %893, %v41
    %v895 = vpop.permute.xlu0 %894
    %897 = vset.pattern.permute.xlu0 3
    %898 = vperm.xlu0 %897, %v42
    %v899 = vpop.permute.xlu0 %898
    %901 = vset.pattern.permute.xlu0 3
    %902 = vperm.xlu0 %901, %v43
    %v903 = vpop.permute.xlu0 %902
    %905 = vset.pattern.permute.xlu0 3
    %906 = vperm.xlu0 %905, %v44
    %v907 = vpop.permute.xlu0 %906
    %909 = vset.pattern.permute.xlu0 3
    %910 = vperm.xlu0 %909, %v45
    %v911 = vpop.permute.xlu0 %910
    %913 = vset.pattern.permute.xlu0 3
    %914 = vperm.xlu0 %913, %v46
    %v915 = vpop.permute.xlu0 %914
    %917 = vset.pattern.permute.xlu0 3
    %918 = vperm.xlu0 %917, %v47
    %v919 = vpop.permute.xlu0 %918
    %921 = vset.pattern.permute.xlu0 3
    %922 = vperm.xlu0 %921, %v48
    %v923 = vpop.permute.xlu0 %922
    %v925 = vlaneseq
    %v926 = vshrl.u32 %v925, 7
    %v927 = vsub.s32 3, %v926
    %v928 = vrot.slane %v16, %v927
    %v929 = vmul.f32 %v799, %v928
    %v930 = vmul.f32 %v803, %v928
    %v931 = vmul.f32 %v807, %v928
    %v932 = vmul.f32 %v811, %v928
    %v933 = vmul.f32 %v815, %v928
    %v934 = vmul.f32 %v819, %v928
    %v935 = vmul.f32 %v823, %v928
    %v936 = vmul.f32 %v827, %v928
    %v937 = vmul.f32 %v831, %v928
    %v938 = vmul.f32 %v835, %v928
    %v939 = vmul.f32 %v839, %v928
    %v940 = vmul.f32 %v843, %v928
    %v941 = vmul.f32 %v847, %v928
    %v942 = vmul.f32 %v851, %v928
    %v943 = vmul.f32 %v855, %v928
    %v944 = vmul.f32 %v859, %v928
    %v945 = vmul.f32 %v863, %v928
    %v946 = vmul.f32 %v867, %v928
    %v947 = vmul.f32 %v871, %v928
    %v948 = vmul.f32 %v875, %v928
    %v949 = vmul.f32 %v879, %v928
    %v950 = vmul.f32 %v883, %v928
    %v951 = vmul.f32 %v887, %v928
    %v952 = vmul.f32 %v891, %v928
    %v953 = vmul.f32 %v895, %v928
    %v954 = vmul.f32 %v899, %v928
    %v955 = vmul.f32 %v903, %v928
    %v956 = vmul.f32 %v907, %v928
    %v957 = vmul.f32 %v911, %v928
    %v958 = vmul.f32 %v915, %v928
    %v959 = vmul.f32 %v919, %v928
    %v960 = vmul.f32 %v923, %v928
    %v961 = vadd.f32 %v765, %v929
    %v962 = vadd.f32 %v766, %v930
    %v963 = vadd.f32 %v767, %v931
    %v964 = vadd.f32 %v768, %v932
    %v965 = vadd.f32 %v769, %v933
    %v966 = vadd.f32 %v770, %v934
    %v967 = vadd.f32 %v771, %v935
    %v968 = vadd.f32 %v772, %v936
    %v969 = vadd.f32 %v773, %v937
    %v970 = vadd.f32 %v774, %v938
    %v971 = vadd.f32 %v775, %v939
    %v972 = vadd.f32 %v776, %v940
    %v973 = vadd.f32 %v777, %v941
    %v974 = vadd.f32 %v778, %v942
    %v975 = vadd.f32 %v779, %v943
    %v976 = vadd.f32 %v780, %v944
    %v977 = vadd.f32 %v781, %v945
    %v978 = vadd.f32 %v782, %v946
    %v979 = vadd.f32 %v783, %v947
    %v980 = vadd.f32 %v784, %v948
    %v981 = vadd.f32 %v785, %v949
    %v982 = vadd.f32 %v786, %v950
    %v983 = vadd.f32 %v787, %v951
    %v984 = vadd.f32 %v788, %v952
    %v985 = vadd.f32 %v789, %v953
    %v986 = vadd.f32 %v790, %v954
    %v987 = vadd.f32 %v791, %v955
    %v988 = vadd.f32 %v792, %v956
    %v989 = vadd.f32 %v793, %v957
    %v990 = vadd.f32 %v794, %v958
    %v991 = vadd.f32 %v795, %v959
    %v992 = vadd.f32 %v796, %v960
    %vm993 = vcmp.gt.f32.partialorder %v961, 0.0
    %vm994 = vcmp.gt.f32.partialorder %v962, 0.0
    %vm995 = vcmp.gt.f32.partialorder %v963, 0.0
    %vm996 = vcmp.gt.f32.partialorder %v964, 0.0
    %vm997 = vcmp.gt.f32.partialorder %v965, 0.0
    %vm998 = vcmp.gt.f32.partialorder %v966, 0.0
    %vm999 = vcmp.gt.f32.partialorder %v967, 0.0
    %vm1000 = vcmp.gt.f32.partialorder %v968, 0.0
    %vm1001 = vcmp.gt.f32.partialorder %v969, 0.0
    %vm1002 = vcmp.gt.f32.partialorder %v970, 0.0
    %vm1003 = vcmp.gt.f32.partialorder %v971, 0.0
    %vm1004 = vcmp.gt.f32.partialorder %v972, 0.0
    %vm1005 = vcmp.gt.f32.partialorder %v973, 0.0
    %vm1006 = vcmp.gt.f32.partialorder %v974, 0.0
    %vm1007 = vcmp.gt.f32.partialorder %v975, 0.0
    %vm1008 = vcmp.gt.f32.partialorder %v976, 0.0
    %vm1009 = vcmp.gt.f32.partialorder %v977, 0.0
    %vm1010 = vcmp.gt.f32.partialorder %v978, 0.0
    %vm1011 = vcmp.gt.f32.partialorder %v979, 0.0
    %vm1012 = vcmp.gt.f32.partialorder %v980, 0.0
    %vm1013 = vcmp.gt.f32.partialorder %v981, 0.0
    %vm1014 = vcmp.gt.f32.partialorder %v982, 0.0
    %vm1015 = vcmp.gt.f32.partialorder %v983, 0.0
    %vm1016 = vcmp.gt.f32.partialorder %v984, 0.0
    %vm1017 = vcmp.gt.f32.partialorder %v985, 0.0
    %vm1018 = vcmp.gt.f32.partialorder %v986, 0.0
    %vm1019 = vcmp.gt.f32.partialorder %v987, 0.0
    %vm1020 = vcmp.gt.f32.partialorder %v988, 0.0
    %vm1021 = vcmp.gt.f32.partialorder %v989, 0.0
    %vm1022 = vcmp.gt.f32.partialorder %v990, 0.0
    %vm1023 = vcmp.gt.f32.partialorder %v991, 0.0
    %vm1024 = vcmp.gt.f32.partialorder %v992, 0.0
    %v1025 = vmul.f32 %v961, 0.01
    %v1026 = vmul.f32 %v962, 0.01
    %v1027 = vmul.f32 %v963, 0.01
    %v1028 = vmul.f32 %v964, 0.01
    %v1029 = vmul.f32 %v965, 0.01
    %v1030 = vmul.f32 %v966, 0.01
    %v1031 = vmul.f32 %v967, 0.01
    %v1032 = vmul.f32 %v968, 0.01
    %v1033 = vmul.f32 %v969, 0.01
    %v1034 = vmul.f32 %v970, 0.01
    %v1035 = vmul.f32 %v971, 0.01
    %v1036 = vmul.f32 %v972, 0.01
    %v1037 = vmul.f32 %v973, 0.01
    %v1038 = vmul.f32 %v974, 0.01
    %v1039 = vmul.f32 %v975, 0.01
    %v1040 = vmul.f32 %v976, 0.01
    %v1041 = vmul.f32 %v977, 0.01
    %v1042 = vmul.f32 %v978, 0.01
    %v1043 = vmul.f32 %v979, 0.01
    %v1044 = vmul.f32 %v980, 0.01
    %v1045 = vmul.f32 %v981, 0.01
    %v1046 = vmul.f32 %v982, 0.01
    %v1047 = vmul.f32 %v983, 0.01
    %v1048 = vmul.f32 %v984, 0.01
    %v1049 = vmul.f32 %v985, 0.01
    %v1050 = vmul.f32 %v986, 0.01
    %v1051 = vmul.f32 %v987, 0.01
    %v1052 = vmul.f32 %v988, 0.01
    %v1053 = vmul.f32 %v989, 0.01
    %v1054 = vmul.f32 %v990, 0.01
    %v1055 = vmul.f32 %v991, 0.01
    %v1056 = vmul.f32 %v992, 0.01
    %v1057 = vsel %vm993, %v961, %v1025
    %v1058 = vsel %vm994, %v962, %v1026
    %v1059 = vsel %vm995, %v963, %v1027
    %v1060 = vsel %vm996, %v964, %v1028
    %v1061 = vsel %vm997, %v965, %v1029
    %v1062 = vsel %vm998, %v966, %v1030
    %v1063 = vsel %vm999, %v967, %v1031
    %v1064 = vsel %vm1000, %v968, %v1032
    %v1065 = vsel %vm1001, %v969, %v1033
    %v1066 = vsel %vm1002, %v970, %v1034
    %v1067 = vsel %vm1003, %v971, %v1035
    %v1068 = vsel %vm1004, %v972, %v1036
    %v1069 = vsel %vm1005, %v973, %v1037
    %v1070 = vsel %vm1006, %v974, %v1038
    %v1071 = vsel %vm1007, %v975, %v1039
    %v1072 = vsel %vm1008, %v976, %v1040
    %v1073 = vsel %vm1009, %v977, %v1041
    %v1074 = vsel %vm1010, %v978, %v1042
    %v1075 = vsel %vm1011, %v979, %v1043
    %v1076 = vsel %vm1012, %v980, %v1044
    %v1077 = vsel %vm1013, %v981, %v1045
    %v1078 = vsel %vm1014, %v982, %v1046
    %v1079 = vsel %vm1015, %v983, %v1047
    %v1080 = vsel %vm1016, %v984, %v1048
    %v1081 = vsel %vm1017, %v985, %v1049
    %v1082 = vsel %vm1018, %v986, %v1050
    %v1083 = vsel %vm1019, %v987, %v1051
    %v1084 = vsel %vm1020, %v988, %v1052
    %v1085 = vsel %vm1021, %v989, %v1053
    %v1086 = vsel %vm1022, %v990, %v1054
    %v1087 = vsel %vm1023, %v991, %v1055
    %v1088 = vsel %vm1024, %v992, %v1056
    %v1089 = vld [vmem:[%s1] sm:$0xff]
    %v1090 = vld [vmem:[%s1 + $0x8] sm:$0xff]
    %v1091 = vld [vmem:[%s1 + $0x10] sm:$0xff]
    %v1092 = vld [vmem:[%s1 + $0x18] sm:$0xff]
    %v1093 = vld [vmem:[%s1 + $0x20] sm:$0xff]
    %v1094 = vld [vmem:[%s1 + $0x28] sm:$0xff]
    %v1095 = vld [vmem:[%s1 + $0x30] sm:$0xff]
    %v1096 = vld [vmem:[%s1 + $0x38] sm:$0xff]
    %v1097 = vld [vmem:[%s1 + $0x40] sm:$0xff]
    %v1098 = vld [vmem:[%s1 + $0x48] sm:$0xff]
    %v1099 = vld [vmem:[%s1 + $0x50] sm:$0xff]
    %v1100 = vld [vmem:[%s1 + $0x58] sm:$0xff]
    %v1101 = vld [vmem:[%s1 + $0x60] sm:$0xff]
    %v1102 = vld [vmem:[%s1 + $0x68] sm:$0xff]
    %v1103 = vld [vmem:[%s1 + $0x70] sm:$0xff]
    %v1104 = vld [vmem:[%s1 + $0x78] sm:$0xff]
    %v1105 = vld [vmem:[%s1 + $0x80] sm:$0xff]
    %v1106 = vld [vmem:[%s1 + $0x88] sm:$0xff]
    %v1107 = vld [vmem:[%s1 + $0x90] sm:$0xff]
    %v1108 = vld [vmem:[%s1 + $0x98] sm:$0xff]
    %v1109 = vld [vmem:[%s1 + $0xa0] sm:$0xff]
    %v1110 = vld [vmem:[%s1 + $0xa8] sm:$0xff]
    %v1111 = vld [vmem:[%s1 + $0xb0] sm:$0xff]
    %v1112 = vld [vmem:[%s1 + $0xb8] sm:$0xff]
    %v1113 = vld [vmem:[%s1 + $0xc0] sm:$0xff]
    %v1114 = vld [vmem:[%s1 + $0xc8] sm:$0xff]
    %v1115 = vld [vmem:[%s1 + $0xd0] sm:$0xff]
    %v1116 = vld [vmem:[%s1 + $0xd8] sm:$0xff]
    %v1117 = vld [vmem:[%s1 + $0xe0] sm:$0xff]
    %v1118 = vld [vmem:[%s1 + $0xe8] sm:$0xff]
    %v1119 = vld [vmem:[%s1 + $0xf0] sm:$0xff]
    %v1120 = vld [vmem:[%s1 + $0xf8] sm:$0xff]
    %v1121 = vpack.c.bf16 %v1058, %v1057
    %v1122 = vpack.c.bf16 %v1060, %v1059
    %v1123 = vpack.c.bf16 %v1062, %v1061
    %v1124 = vpack.c.bf16 %v1064, %v1063
    %v1125 = vpack.c.bf16 %v1066, %v1065
    %v1126 = vpack.c.bf16 %v1068, %v1067
    %v1127 = vpack.c.bf16 %v1070, %v1069
    %v1128 = vpack.c.bf16 %v1072, %v1071
    %v1129 = vpack.c.bf16 %v1074, %v1073
    %v1130 = vpack.c.bf16 %v1076, %v1075
    %v1131 = vpack.c.bf16 %v1078, %v1077
    %v1132 = vpack.c.bf16 %v1080, %v1079
    %v1133 = vpack.c.bf16 %v1082, %v1081
    %v1134 = vpack.c.bf16 %v1084, %v1083
    %v1135 = vpack.c.bf16 %v1086, %v1085
    %v1136 = vpack.c.bf16 %v1088, %v1087
    %1137 = vset.pattern.permute.xlu0 5
    %1138 = vperm.xlu0 %1137, %v17
    %v1139 = vpop.permute.xlu0 %1138
    %1141 = vset.pattern.permute.xlu0 5
    %1142 = vperm.xlu0 %1141, %v18
    %v1143 = vpop.permute.xlu0 %1142
    %1145 = vset.pattern.permute.xlu0 5
    %1146 = vperm.xlu0 %1145, %v19
    %v1147 = vpop.permute.xlu0 %1146
    %1149 = vset.pattern.permute.xlu0 5
    %1150 = vperm.xlu0 %1149, %v20
    %v1151 = vpop.permute.xlu0 %1150
    %1153 = vset.pattern.permute.xlu0 5
    %1154 = vperm.xlu0 %1153, %v21
    %v1155 = vpop.permute.xlu0 %1154
    %1157 = vset.pattern.permute.xlu0 5
    %1158 = vperm.xlu0 %1157, %v22
    %v1159 = vpop.permute.xlu0 %1158
    %1161 = vset.pattern.permute.xlu0 5
    %1162 = vperm.xlu0 %1161, %v23
    %v1163 = vpop.permute.xlu0 %1162
    %1165 = vset.pattern.permute.xlu0 5
    %1166 = vperm.xlu0 %1165, %v24
    %v1167 = vpop.permute.xlu0 %1166
    %1169 = vset.pattern.permute.xlu0 5
    %1170 = vperm.xlu0 %1169, %v25
    %v1171 = vpop.permute.xlu0 %1170
    %1173 = vset.pattern.permute.xlu0 5
    %1174 = vperm.xlu0 %1173, %v26
    %v1175 = vpop.permute.xlu0 %1174
    %1177 = vset.pattern.permute.xlu0 5
    %1178 = vperm.xlu0 %1177, %v27
    %v1179 = vpop.permute.xlu0 %1178
    %1181 = vset.pattern.permute.xlu0 5
    %1182 = vperm.xlu0 %1181, %v28
    %v1183 = vpop.permute.xlu0 %1182
    %1185 = vset.pattern.permute.xlu0 5
    %1186 = vperm.xlu0 %1185, %v29
    %v1187 = vpop.permute.xlu0 %1186
    %1189 = vset.pattern.permute.xlu0 5
    %1190 = vperm.xlu0 %1189, %v30
    %v1191 = vpop.permute.xlu0 %1190
    %1193 = vset.pattern.permute.xlu0 5
    %1194 = vperm.xlu0 %1193, %v31
    %v1195 = vpop.permute.xlu0 %1194
    %1197 = vset.pattern.permute.xlu0 5
    %1198 = vperm.xlu0 %1197, %v32
    %v1199 = vpop.permute.xlu0 %1198
    %1201 = vset.pattern.permute.xlu0 5
    %1202 = vperm.xlu0 %1201, %v33
    %v1203 = vpop.permute.xlu0 %1202
    %1205 = vset.pattern.permute.xlu0 5
    %1206 = vperm.xlu0 %1205, %v34
    %v1207 = vpop.permute.xlu0 %1206
    %1209 = vset.pattern.permute.xlu0 5
    %1210 = vperm.xlu0 %1209, %v35
    %v1211 = vpop.permute.xlu0 %1210
    %1213 = vset.pattern.permute.xlu0 5
    %1214 = vperm.xlu0 %1213, %v36
    %v1215 = vpop.permute.xlu0 %1214
    %1217 = vset.pattern.permute.xlu0 5
    %1218 = vperm.xlu0 %1217, %v37
    %v1219 = vpop.permute.xlu0 %1218
    %1221 = vset.pattern.permute.xlu0 5
    %1222 = vperm.xlu0 %1221, %v38
    %v1223 = vpop.permute.xlu0 %1222
    %1225 = vset.pattern.permute.xlu0 5
    %1226 = vperm.xlu0 %1225, %v39
    %v1227 = vpop.permute.xlu0 %1226
    %1229 = vset.pattern.permute.xlu0 5
    %1230 = vperm.xlu0 %1229, %v40
    %v1231 = vpop.permute.xlu0 %1230
    %1233 = vset.pattern.permute.xlu0 5
    %1234 = vperm.xlu0 %1233, %v41
    %v1235 = vpop.permute.xlu0 %1234
    %1237 = vset.pattern.permute.xlu0 5
    %1238 = vperm.xlu0 %1237, %v42
    %v1239 = vpop.permute.xlu0 %1238
    %1241 = vset.pattern.permute.xlu0 5
    %1242 = vperm.xlu0 %1241, %v43
    %v1243 = vpop.permute.xlu0 %1242
    %1245 = vset.pattern.permute.xlu0 5
    %1246 = vperm.xlu0 %1245, %v44
    %v1247 = vpop.permute.xlu0 %1246
    %1249 = vset.pattern.permute.xlu0 5
    %1250 = vperm.xlu0 %1249, %v45
    %v1251 = vpop.permute.xlu0 %1250
    %1253 = vset.pattern.permute.xlu0 5
    %1254 = vperm.xlu0 %1253, %v46
    %v1255 = vpop.permute.xlu0 %1254
    %1257 = vset.pattern.permute.xlu0 5
    %1258 = vperm.xlu0 %1257, %v47
    %v1259 = vpop.permute.xlu0 %1258
    %1261 = vset.pattern.permute.xlu0 5
    %1262 = vperm.xlu0 %1261, %v48
    %v1263 = vpop.permute.xlu0 %1262
    %v1297 = vunpack.c.l.b16 %v1089
    %v1298 = vunpack.c.h.b16 %v1089
    %v1299 = vunpack.c.l.b16 %v1090
    %v1300 = vunpack.c.h.b16 %v1090
    %v1301 = vunpack.c.l.b16 %v1091
    %v1302 = vunpack.c.h.b16 %v1091
    %v1303 = vunpack.c.l.b16 %v1092
    %v1304 = vunpack.c.h.b16 %v1092
    %v1305 = vunpack.c.l.b16 %v1093
    %v1306 = vunpack.c.h.b16 %v1093
    %v1307 = vunpack.c.l.b16 %v1094
    %v1308 = vunpack.c.h.b16 %v1094
    %v1309 = vunpack.c.l.b16 %v1095
    %v1310 = vunpack.c.h.b16 %v1095
    %v1311 = vunpack.c.l.b16 %v1096
    %v1312 = vunpack.c.h.b16 %v1096
    %v1313 = vunpack.c.l.b16 %v1097
    %v1314 = vunpack.c.h.b16 %v1097
    %v1315 = vunpack.c.l.b16 %v1098
    %v1316 = vunpack.c.h.b16 %v1098
    %v1317 = vunpack.c.l.b16 %v1099
    %v1318 = vunpack.c.h.b16 %v1099
    %v1319 = vunpack.c.l.b16 %v1100
    %v1320 = vunpack.c.h.b16 %v1100
    %v1321 = vunpack.c.l.b16 %v1101
    %v1322 = vunpack.c.h.b16 %v1101
    %v1323 = vunpack.c.l.b16 %v1102
    %v1324 = vunpack.c.h.b16 %v1102
    %v1325 = vunpack.c.l.b16 %v1103
    %v1326 = vunpack.c.h.b16 %v1103
    %v1327 = vunpack.c.l.b16 %v1104
    %v1328 = vunpack.c.h.b16 %v1104
    %v1329 = vunpack.c.l.b16 %v1105
    %v1330 = vunpack.c.h.b16 %v1105
    %v1331 = vunpack.c.l.b16 %v1106
    %v1332 = vunpack.c.h.b16 %v1106
    %v1333 = vunpack.c.l.b16 %v1107
    %v1334 = vunpack.c.h.b16 %v1107
    %v1335 = vunpack.c.l.b16 %v1108
    %v1336 = vunpack.c.h.b16 %v1108
    %v1337 = vunpack.c.l.b16 %v1109
    %v1338 = vunpack.c.h.b16 %v1109
    %v1339 = vunpack.c.l.b16 %v1110
    %v1340 = vunpack.c.h.b16 %v1110
    %v1341 = vunpack.c.l.b16 %v1111
    %v1342 = vunpack.c.h.b16 %v1111
    %v1343 = vunpack.c.l.b16 %v1112
    %v1344 = vunpack.c.h.b16 %v1112
    %v1345 = vunpack.c.l.b16 %v1113
    %v1346 = vunpack.c.h.b16 %v1113
    %v1347 = vunpack.c.l.b16 %v1114
    %v1348 = vunpack.c.h.b16 %v1114
    %v1349 = vunpack.c.l.b16 %v1115
    %v1350 = vunpack.c.h.b16 %v1115
    %v1351 = vunpack.c.l.b16 %v1116
    %v1352 = vunpack.c.h.b16 %v1116
    %v1353 = vunpack.c.l.b16 %v1117
    %v1354 = vunpack.c.h.b16 %v1117
    %v1355 = vunpack.c.l.b16 %v1118
    %v1356 = vunpack.c.h.b16 %v1118
    %v1357 = vunpack.c.l.b16 %v1119
    %v1358 = vunpack.c.h.b16 %v1119
    %v1359 = vunpack.c.l.b16 %v1120
    %v1360 = vunpack.c.h.b16 %v1120
    %v1361 = vpack.c.b16 %v1299, %v1297
    %v1362 = vpack.c.b16 %v1300, %v1298
    %v1363 = vpack.c.b16 %v1303, %v1301
    %v1364 = vpack.c.b16 %v1304, %v1302
    %v1365 = vpack.c.b16 %v1307, %v1305
    %v1366 = vpack.c.b16 %v1308, %v1306
    %v1367 = vpack.c.b16 %v1311, %v1309
    %v1368 = vpack.c.b16 %v1312, %v1310
    %v1369 = vpack.c.b16 %v1315, %v1313
    %v1370 = vpack.c.b16 %v1316, %v1314
    %v1371 = vpack.c.b16 %v1319, %v1317
    %v1372 = vpack.c.b16 %v1320, %v1318
    %v1373 = vpack.c.b16 %v1323, %v1321
    %v1374 = vpack.c.b16 %v1324, %v1322
    %v1375 = vpack.c.b16 %v1327, %v1325
    %v1376 = vpack.c.b16 %v1328, %v1326
    %v1377 = vpack.c.b16 %v1331, %v1329
    %v1378 = vpack.c.b16 %v1332, %v1330
    %v1379 = vpack.c.b16 %v1335, %v1333
    %v1380 = vpack.c.b16 %v1336, %v1334
    %v1381 = vpack.c.b16 %v1339, %v1337
    %v1382 = vpack.c.b16 %v1340, %v1338
    %v1383 = vpack.c.b16 %v1343, %v1341
    %v1384 = vpack.c.b16 %v1344, %v1342
    %v1385 = vpack.c.b16 %v1347, %v1345
    %v1386 = vpack.c.b16 %v1348, %v1346
    %v1387 = vpack.c.b16 %v1351, %v1349
    %v1388 = vpack.c.b16 %v1352, %v1350
    %v1389 = vpack.c.b16 %v1355, %v1353
    %v1390 = vpack.c.b16 %v1356, %v1354
    %v1391 = vpack.c.b16 %v1359, %v1357
    %v1392 = vpack.c.b16 %v1360, %v1358
    %1425 = vmatprep.subr.bf16.mxu0 0
    %1426 = vmatpush1.bf16.msra.mxu0 %v1121
    %1427 = vmatprep.subr.bf16.mxu0 0
    %1428 = vmatpush1.bf16.msra.mxu0 %v1122
    %1429 = vmatprep.subr.bf16.mxu0 0
    %1430 = vmatpush1.bf16.msra.mxu0 %v1123
    %1431 = vmatprep.subr.bf16.mxu0 0
    %1432 = vmatpush1.bf16.msra.mxu0 %v1124
    %1433 = vmatprep.subr.bf16.mxu0 0
    %1434 = vmatpush1.bf16.msra.mxu0 %v1125
    %1435 = vmatprep.subr.bf16.mxu0 0
    %1436 = vmatpush1.bf16.msra.mxu0 %v1126
    %1437 = vmatprep.subr.bf16.mxu0 0
    %1438 = vmatpush1.bf16.msra.mxu0 %v1127
    %1439 = vmatprep.subr.bf16.mxu0 0
    %1440 = vmatpush1.bf16.msra.mxu0 %v1128
    %1441 = vmatprep.subr.bf16.mxu0 0
    %1442 = vmatpush1.bf16.msra.mxu0 %v1129
    %1443 = vmatprep.subr.bf16.mxu0 0
    %1444 = vmatpush1.bf16.msra.mxu0 %v1130
    %1445 = vmatprep.subr.bf16.mxu0 0
    %1446 = vmatpush1.bf16.msra.mxu0 %v1131
    %1447 = vmatprep.subr.bf16.mxu0 0
    %1448 = vmatpush1.bf16.msra.mxu0 %v1132
    %1449 = vmatprep.subr.bf16.mxu0 0
    %1450 = vmatpush1.bf16.msra.mxu0 %v1133
    %1451 = vmatprep.subr.bf16.mxu0 0
    %1452 = vmatpush1.bf16.msra.mxu0 %v1134
    %1453 = vmatprep.subr.bf16.mxu0 0
    %1454 = vmatpush1.bf16.msra.mxu0 %v1135
    %1455 = vmatprep.subr.bf16.mxu0 0
    %1456 = vmatpush1.bf16.msra.mxu0 %v1136
    %1457 = vmatprep.mubr.bf16.mxu0 %v1362
    %1458 = vmatmul.mubr.bf16.gmra.mrb[0].mxu0 %v1361
    %v1459 = vpop.f32.mrb[0].mxu0
    %v1460 = vadd.f32 %v1139, %v1459
    %v1461 = vpop.f32.mrb[0].mxu0
    %v1462 = vpop.f32.mrb[0].mxu0
    %v1463 = vadd.f32 %v1143, %v1462
    %v1464 = vpop.f32.mrb[0].mxu0
    %1465 = vmatprep.mubr.bf16.mxu0 %v1364
    %1466 = vmatmul.mubr.bf16.gmra.mrb[0].mxu0 %v1363
    %v1467 = vpop.f32.mrb[0].mxu0
    %v1468 = vadd.f32 %v1147, %v1467
    %v1469 = vpop.f32.mrb[0].mxu0
    %v1470 = vpop.f32.mrb[0].mxu0
    %v1471 = vadd.f32 %v1151, %v1470
    %v1472 = vpop.f32.mrb[0].mxu0
    %1473 = vmatprep.mubr.bf16.mxu0 %v1366
    %1474 = vmatmul.mubr.bf16.gmra.mrb[0].mxu0 %v1365
    %v1475 = vpop.f32.mrb[0].mxu0
    %v1476 = vadd.f32 %v1155, %v1475
    %v1477 = vpop.f32.mrb[0].mxu0
    %v1478 = vpop.f32.mrb[0].mxu0
    %v1479 = vadd.f32 %v1159, %v1478
    %v1480 = vpop.f32.mrb[0].mxu0
    %1481 = vmatprep.mubr.bf16.mxu0 %v1368
    %1482 = vmatmul.mubr.bf16.gmra.mrb[0].mxu0 %v1367
    %v1483 = vpop.f32.mrb[0].mxu0
    %v1484 = vadd.f32 %v1163, %v1483
    %v1485 = vpop.f32.mrb[0].mxu0
    %v1486 = vpop.f32.mrb[0].mxu0
    %v1487 = vadd.f32 %v1167, %v1486
    %v1488 = vpop.f32.mrb[0].mxu0
    %1489 = vmatprep.mubr.bf16.mxu0 %v1370
    %1490 = vmatmul.mubr.bf16.gmra.mrb[0].mxu0 %v1369
    %v1491 = vpop.f32.mrb[0].mxu0
    %v1492 = vadd.f32 %v1171, %v1491
    %v1493 = vpop.f32.mrb[0].mxu0
    %v1494 = vpop.f32.mrb[0].mxu0
    %v1495 = vadd.f32 %v1175, %v1494
    %v1496 = vpop.f32.mrb[0].mxu0
    %1497 = vmatprep.mubr.bf16.mxu0 %v1372
    %1498 = vmatmul.mubr.bf16.gmra.mrb[0].mxu0 %v1371
    %v1499 = vpop.f32.mrb[0].mxu0
    %v1500 = vadd.f32 %v1179, %v1499
    %v1501 = vpop.f32.mrb[0].mxu0
    %v1502 = vpop.f32.mrb[0].mxu0
    %v1503 = vadd.f32 %v1183, %v1502
    %v1504 = vpop.f32.mrb[0].mxu0
    %1505 = vmatprep.mubr.bf16.mxu0 %v1374
    %1506 = vmatmul.mubr.bf16.gmra.mrb[0].mxu0 %v1373
    %v1507 = vpop.f32.mrb[0].mxu0
    %v1508 = vadd.f32 %v1187, %v1507
    %v1509 = vpop.f32.mrb[0].mxu0
    %v1510 = vpop.f32.mrb[0].mxu0
    %v1511 = vadd.f32 %v1191, %v1510
    %v1512 = vpop.f32.mrb[0].mxu0
    %1513 = vmatprep.mubr.bf16.mxu0 %v1376
    %1514 = vmatmul.mubr.bf16.gmra.mrb[0].mxu0 %v1375
    %v1515 = vpop.f32.mrb[0].mxu0
    %v1516 = vadd.f32 %v1195, %v1515
    %v1517 = vpop.f32.mrb[0].mxu0
    %v1518 = vpop.f32.mrb[0].mxu0
    %v1519 = vadd.f32 %v1199, %v1518
    %v1520 = vpop.f32.mrb[0].mxu0
    %1521 = vmatprep.mubr.bf16.mxu0 %v1378
    %1522 = vmatmul.mubr.bf16.gmra.mrb[0].mxu0 %v1377
    %v1523 = vpop.f32.mrb[0].mxu0
    %v1524 = vadd.f32 %v1203, %v1523
    %v1525 = vpop.f32.mrb[0].mxu0
    %v1526 = vpop.f32.mrb[0].mxu0
    %v1527 = vadd.f32 %v1207, %v1526
    %v1528 = vpop.f32.mrb[0].mxu0
    %1529 = vmatprep.mubr.bf16.mxu0 %v1380
    %1530 = vmatmul.mubr.bf16.gmra.mrb[0].mxu0 %v1379
    %v1531 = vpop.f32.mrb[0].mxu0
    %v1532 = vadd.f32 %v1211, %v1531
    %v1533 = vpop.f32.mrb[0].mxu0
    %v1534 = vpop.f32.mrb[0].mxu0
    %v1535 = vadd.f32 %v1215, %v1534
    %v1536 = vpop.f32.mrb[0].mxu0
    %1537 = vmatprep.mubr.bf16.mxu0 %v1382
    %1538 = vmatmul.mubr.bf16.gmra.mrb[0].mxu0 %v1381
    %v1539 = vpop.f32.mrb[0].mxu0
    %v1540 = vadd.f32 %v1219, %v1539
    %v1541 = vpop.f32.mrb[0].mxu0
    %v1542 = vpop.f32.mrb[0].mxu0
    %v1543 = vadd.f32 %v1223, %v1542
    %v1544 = vpop.f32.mrb[0].mxu0
    %1545 = vmatprep.mubr.bf16.mxu0 %v1384
    %1546 = vmatmul.mubr.bf16.gmra.mrb[0].mxu0 %v1383
    %v1547 = vpop.f32.mrb[0].mxu0
    %v1548 = vadd.f32 %v1227, %v1547
    %v1549 = vpop.f32.mrb[0].mxu0
    %v1550 = vpop.f32.mrb[0].mxu0
    %v1551 = vadd.f32 %v1231, %v1550
    %v1552 = vpop.f32.mrb[0].mxu0
    %1553 = vmatprep.mubr.bf16.mxu0 %v1386
    %1554 = vmatmul.mubr.bf16.gmra.mrb[0].mxu0 %v1385
    %v1555 = vpop.f32.mrb[0].mxu0
    %v1556 = vadd.f32 %v1235, %v1555
    %v1557 = vpop.f32.mrb[0].mxu0
    %v1558 = vpop.f32.mrb[0].mxu0
    %v1559 = vadd.f32 %v1239, %v1558
    %v1560 = vpop.f32.mrb[0].mxu0
    %1561 = vmatprep.mubr.bf16.mxu0 %v1388
    %1562 = vmatmul.mubr.bf16.gmra.mrb[0].mxu0 %v1387
    %v1563 = vpop.f32.mrb[0].mxu0
    %v1564 = vadd.f32 %v1243, %v1563
    %v1565 = vpop.f32.mrb[0].mxu0
    %v1566 = vpop.f32.mrb[0].mxu0
    %v1567 = vadd.f32 %v1247, %v1566
    %v1568 = vpop.f32.mrb[0].mxu0
    %1569 = vmatprep.mubr.bf16.mxu0 %v1390
    %1570 = vmatmul.mubr.bf16.gmra.mrb[0].mxu0 %v1389
    %v1571 = vpop.f32.mrb[0].mxu0
    %v1572 = vadd.f32 %v1251, %v1571
    %v1573 = vpop.f32.mrb[0].mxu0
    %v1574 = vpop.f32.mrb[0].mxu0
    %v1575 = vadd.f32 %v1255, %v1574
    %v1576 = vpop.f32.mrb[0].mxu0
    %1577 = vmatprep.mubr.bf16.mxu0 %v1392
    %1578 = vmatmul.mubr.bf16.gmra.mrb[0].mxu0 %v1391
    %v1579 = vpop.f32.mrb[0].mxu0
    %v1580 = vadd.f32 %v1259, %v1579
    %v1581 = vpop.f32.mrb[0].mxu0
    %v1582 = vpop.f32.mrb[0].mxu0
    %v1583 = vadd.f32 %v1263, %v1582
    %v1584 = vpop.f32.mrb[0].mxu0
    %1585 = vdwg.mxu0
    %vm1586 = vcmp.gt.f32.partialorder %v1460, 0.0
    %vm1587 = vcmp.gt.f32.partialorder %v1463, 0.0
    %vm1588 = vcmp.gt.f32.partialorder %v1468, 0.0
    %vm1589 = vcmp.gt.f32.partialorder %v1471, 0.0
    %vm1590 = vcmp.gt.f32.partialorder %v1476, 0.0
    %vm1591 = vcmp.gt.f32.partialorder %v1479, 0.0
    %vm1592 = vcmp.gt.f32.partialorder %v1484, 0.0
    %vm1593 = vcmp.gt.f32.partialorder %v1487, 0.0
    %vm1594 = vcmp.gt.f32.partialorder %v1492, 0.0
    %vm1595 = vcmp.gt.f32.partialorder %v1495, 0.0
    %vm1596 = vcmp.gt.f32.partialorder %v1500, 0.0
    %vm1597 = vcmp.gt.f32.partialorder %v1503, 0.0
    %vm1598 = vcmp.gt.f32.partialorder %v1508, 0.0
    %vm1599 = vcmp.gt.f32.partialorder %v1511, 0.0
    %vm1600 = vcmp.gt.f32.partialorder %v1516, 0.0
    %vm1601 = vcmp.gt.f32.partialorder %v1519, 0.0
    %vm1602 = vcmp.gt.f32.partialorder %v1524, 0.0
    %vm1603 = vcmp.gt.f32.partialorder %v1527, 0.0
    %vm1604 = vcmp.gt.f32.partialorder %v1532, 0.0
    %vm1605 = vcmp.gt.f32.partialorder %v1535, 0.0
    %vm1606 = vcmp.gt.f32.partialorder %v1540, 0.0
    %vm1607 = vcmp.gt.f32.partialorder %v1543, 0.0
    %vm1608 = vcmp.gt.f32.partialorder %v1548, 0.0
    %vm1609 = vcmp.gt.f32.partialorder %v1551, 0.0
    %vm1610 = vcmp.gt.f32.partialorder %v1556, 0.0
    %vm1611 = vcmp.gt.f32.partialorder %v1559, 0.0
    %vm1612 = vcmp.gt.f32.partialorder %v1564, 0.0
    %vm1613 = vcmp.gt.f32.partialorder %v1567, 0.0
    %vm1614 = vcmp.gt.f32.partialorder %v1572, 0.0
    %vm1615 = vcmp.gt.f32.partialorder %v1575, 0.0
    %vm1616 = vcmp.gt.f32.partialorder %v1580, 0.0
    %vm1617 = vcmp.gt.f32.partialorder %v1583, 0.0
    %v1618 = vmul.f32 %v1460, 0.01
    %v1619 = vmul.f32 %v1463, 0.01
    %v1620 = vmul.f32 %v1468, 0.01
    %v1621 = vmul.f32 %v1471, 0.01
    %v1622 = vmul.f32 %v1476, 0.01
    %v1623 = vmul.f32 %v1479, 0.01
    %v1624 = vmul.f32 %v1484, 0.01
    %v1625 = vmul.f32 %v1487, 0.01
    %v1626 = vmul.f32 %v1492, 0.01
    %v1627 = vmul.f32 %v1495, 0.01
    %v1628 = vmul.f32 %v1500, 0.01
    %v1629 = vmul.f32 %v1503, 0.01
    %v1630 = vmul.f32 %v1508, 0.01
    %v1631 = vmul.f32 %v1511, 0.01
    %v1632 = vmul.f32 %v1516, 0.01
    %v1633 = vmul.f32 %v1519, 0.01
    %v1634 = vmul.f32 %v1524, 0.01
    %v1635 = vmul.f32 %v1527, 0.01
    %v1636 = vmul.f32 %v1532, 0.01
    %v1637 = vmul.f32 %v1535, 0.01
    %v1638 = vmul.f32 %v1540, 0.01
    %v1639 = vmul.f32 %v1543, 0.01
    %v1640 = vmul.f32 %v1548, 0.01
    %v1641 = vmul.f32 %v1551, 0.01
    %v1642 = vmul.f32 %v1556, 0.01
    %v1643 = vmul.f32 %v1559, 0.01
    %v1644 = vmul.f32 %v1564, 0.01
    %v1645 = vmul.f32 %v1567, 0.01
    %v1646 = vmul.f32 %v1572, 0.01
    %v1647 = vmul.f32 %v1575, 0.01
    %v1648 = vmul.f32 %v1580, 0.01
    %v1649 = vmul.f32 %v1583, 0.01
    %v1650 = vsel %vm1586, %v1460, %v1618
    %v1651 = vsel %vm1587, %v1463, %v1619
    %v1652 = vsel %vm1588, %v1468, %v1620
    %v1653 = vsel %vm1589, %v1471, %v1621
    %v1654 = vsel %vm1590, %v1476, %v1622
    %v1655 = vsel %vm1591, %v1479, %v1623
    %v1656 = vsel %vm1592, %v1484, %v1624
    %v1657 = vsel %vm1593, %v1487, %v1625
    %v1658 = vsel %vm1594, %v1492, %v1626
    %v1659 = vsel %vm1595, %v1495, %v1627
    %v1660 = vsel %vm1596, %v1500, %v1628
    %v1661 = vsel %vm1597, %v1503, %v1629
    %v1662 = vsel %vm1598, %v1508, %v1630
    %v1663 = vsel %vm1599, %v1511, %v1631
    %v1664 = vsel %vm1600, %v1516, %v1632
    %v1665 = vsel %vm1601, %v1519, %v1633
    %v1666 = vsel %vm1602, %v1524, %v1634
    %v1667 = vsel %vm1603, %v1527, %v1635
    %v1668 = vsel %vm1604, %v1532, %v1636
    %v1669 = vsel %vm1605, %v1535, %v1637
    %v1670 = vsel %vm1606, %v1540, %v1638
    %v1671 = vsel %vm1607, %v1543, %v1639
    %v1672 = vsel %vm1608, %v1548, %v1640
    %v1673 = vsel %vm1609, %v1551, %v1641
    %v1674 = vsel %vm1610, %v1556, %v1642
    %v1675 = vsel %vm1611, %v1559, %v1643
    %v1676 = vsel %vm1612, %v1564, %v1644
    %v1677 = vsel %vm1613, %v1567, %v1645
    %v1678 = vsel %vm1614, %v1572, %v1646
    %v1679 = vsel %vm1615, %v1575, %v1647
    %v1680 = vsel %vm1616, %v1580, %v1648
    %v1681 = vsel %vm1617, %v1583, %v1649
    %v1682 = vld [vmem:[%s1 + $0x100] sm:$0xff]
    %v1683 = vpack.c.bf16 %v1651, %v1650
    %v1684 = vpack.c.bf16 %v1653, %v1652
    %v1685 = vpack.c.bf16 %v1655, %v1654
    %v1686 = vpack.c.bf16 %v1657, %v1656
    %v1687 = vpack.c.bf16 %v1659, %v1658
    %v1688 = vpack.c.bf16 %v1661, %v1660
    %v1689 = vpack.c.bf16 %v1663, %v1662
    %v1690 = vpack.c.bf16 %v1665, %v1664
    %v1691 = vpack.c.bf16 %v1667, %v1666
    %v1692 = vpack.c.bf16 %v1669, %v1668
    %v1693 = vpack.c.bf16 %v1671, %v1670
    %v1694 = vpack.c.bf16 %v1673, %v1672
    %v1695 = vpack.c.bf16 %v1675, %v1674
    %v1696 = vpack.c.bf16 %v1677, %v1676
    %v1697 = vpack.c.bf16 %v1679, %v1678
    %v1698 = vpack.c.bf16 %v1681, %v1680
    %1699 = vset.pattern.permute.xlu0 6
    %1700 = vperm.xlu0 %1699, %v17
    %v1701 = vpop.permute.xlu0 %1700
    %v1704 = vunpack.c.l.b16 %v1682
    %v1705 = vunpack.c.h.b16 %v1682
    %v1706 = vpack.c.b16 %v1704, %v1704
    %v1707 = vpack.c.b16 %v1705, %v1705
    %1710 = vmatprep.subr.bf16.mxu0 0
    %1711 = vmatpush1.bf16.msra.mxu0 %v1683
    %1712 = vmatprep.subr.bf16.mxu0 0
    %1713 = vmatpush1.bf16.msra.mxu0 %v1684
    %1714 = vmatprep.subr.bf16.mxu0 0
    %1715 = vmatpush1.bf16.msra.mxu0 %v1685
    %1716 = vmatprep.subr.bf16.mxu0 0
    %1717 = vmatpush1.bf16.msra.mxu0 %v1686
    %1718 = vmatprep.subr.bf16.mxu0 0
    %1719 = vmatpush1.bf16.msra.mxu0 %v1687
    %1720 = vmatprep.subr.bf16.mxu0 0
    %1721 = vmatpush1.bf16.msra.mxu0 %v1688
    %1722 = vmatprep.subr.bf16.mxu0 0
    %1723 = vmatpush1.bf16.msra.mxu0 %v1689
    %1724 = vmatprep.subr.bf16.mxu0 0
    %1725 = vmatpush1.bf16.msra.mxu0 %v1690
    %1726 = vmatprep.subr.bf16.mxu0 0
    %1727 = vmatpush1.bf16.msra.mxu0 %v1691
    %1728 = vmatprep.subr.bf16.mxu0 0
    %1729 = vmatpush1.bf16.msra.mxu0 %v1692
    %1730 = vmatprep.subr.bf16.mxu0 0
    %1731 = vmatpush1.bf16.msra.mxu0 %v1693
    %1732 = vmatprep.subr.bf16.mxu0 0
    %1733 = vmatpush1.bf16.msra.mxu0 %v1694
    %1734 = vmatprep.subr.bf16.mxu0 0
    %1735 = vmatpush1.bf16.msra.mxu0 %v1695
    %1736 = vmatprep.subr.bf16.mxu0 0
    %1737 = vmatpush1.bf16.msra.mxu0 %v1696
    %1738 = vmatprep.subr.bf16.mxu0 0
    %1739 = vmatpush1.bf16.msra.mxu0 %v1697
    %1740 = vmatprep.subr.bf16.mxu0 0
    %1741 = vmatpush1.bf16.msra.mxu0 %v1698
    %1742 = vmatprep.mubr.bf16.mxu0 %v1707
    %1743 = vmatmul.mubr.bf16.gmra.mrb[0].mxu0 %v1706
    %v1744 = vpop.f32.mrb[0].mxu0
    %v1745 = vadd.f32 %v1701, %v1744
    %v1746 = vpop.f32.mrb[0].mxu0
    %v1747 = vpop.f32.mrb[0].mxu0
    %v1748 = vpop.f32.mrb[0].mxu0
    %1749 = vdwg.mxu0
    %1750 = vst [vmem:[#allocation2] sm:$0xff] %v1745
    // Predicated region
    $region14: #{tpu_custom_call.1} parent=1 // pred_check
      _
    $region15: #{tpu_custom_call.1} parent=1 // pred_check_branch
      %1752 = sbr.rel (0) target = $region17
    $region16: #{tpu_custom_call.1} parent=1 // pred_region
      %s1754 = ssub.s32 128, 128
      %1755 = vsyncadd [#allocation3], %s1754
      %s1757 = sshll.u32 [#allocation2], 4
      %s1758 = int_to_ptr.vmem [resolvable:$true] %s1757
      %1760 = dma.vmem_to_hbm [thread:$0]  %s1758, 128, %s3, [#allocation3]
    $region17: #{tpu_custom_call.1} parent=1 // pred_fallthru
      _
    // Predicated region
    $region18: #{tpu_custom_call.1} parent=1 // pred_check
      _
    $region19: #{tpu_custom_call.1} parent=1 // pred_check_branch
      %1762 = sbr.rel (0) target = $region21
    $region20: #{tpu_custom_call.1} parent=1 // pred_region
      %1763 = dma.done [#allocation3], 128
    $region21: #{tpu_custom_call.1} parent=1 // pred_fallthru
      _
    %1764 = vsyncpa [#allocation3], 1

</llo_original>
